<compile_context>
chip_gen: v7x
topology: tpu7x:2x2x1
jax: 0.10.0
libtpu: 0.0.40
codegen_flags: <defaults>
</compile_context>

<pallas_src>
import functools
import math

import jax
import jax.numpy as jnp
from jax import lax
from jax.experimental import pallas as pl
from jax.experimental.pallas import tpu as pltpu


def _round_up(x, m):
    return -(-x // m) * m


def _layernorm_kernel(x_ref, seg_ref, segt_ref, alpha_ref, bias_ref, o_ref, *,
                      eps, inv_f, inv_fm1, groups):
    x = x_ref[...].astype(jnp.float32)                 # (T, W)
    seg = seg_ref[...]                                 # (W, G) 0/1 f32

    # Per-row (per-group) sums on the otherwise-idle MXU; HIGHEST precision
    # keeps ~f32 accuracy for the accumulation.
    s1 = jnp.dot(x, seg, preferred_element_type=jnp.float32,
                 precision=lax.Precision.HIGHEST)      # (T, G)
    mean = s1 * inv_f                                  # (T, G)

    if groups > 1:
        # Broadcast per-group stats back to the lane-packed width via the MXU.
        mean_full = jnp.dot(mean, segt_ref[...],
                            preferred_element_type=jnp.float32,
                            precision=lax.Precision.HIGHEST)   # (T, W)
    else:
        mean_full = mean                               # (T, 1) broadcasts

    xc = x - mean_full
    # Two-pass (centered) unbiased variance: matches torch.std exactly, no
    # cancellation. x is already resident in VMEM, so this only costs one
    # elementwise multiply + one MXU dot (same count as the one-pass version).
    s2 = jnp.dot(xc * xc, seg, preferred_element_type=jnp.float32,
                 precision=lax.Precision.HIGHEST)      # (T, G), >= 0
    std = jnp.sqrt(s2 * inv_fm1)

    # eps is added to std (NOT variance) per the reference module.
    denom = std + eps
    # EUP reciprocal + one Newton-Raphson step -> ~f32 precision, no VPU divide.
    r = pl.reciprocal(denom, approx=True)
    r = r * (2.0 - denom * r)

    if groups > 1:
        r_full = jnp.dot(r, segt_ref[...],
                         preferred_element_type=jnp.float32,
                         precision=lax.Precision.HIGHEST)      # (T, W)
    else:
        r_full = r

    # TODO(synk): on v6e/v7x with bf16 I/O this epilogue could run in bf16
    # (2x VALU throughput); kept in f32 for cross-generation accuracy/safety.
    y = alpha_ref[...] * (xc * r_full) + bias_ref[...]
    o_ref[...] = y.astype(o_ref.dtype)


_FALLBACK_VMEM_LIMIT = 48 * 1024 * 1024


def _vmem_limits():
    """(vmem_limit_bytes, tile_budget_bytes), generation-aware."""
    try:
        phys = int(pltpu.get_tpu_info().vmem_capacity_bytes)
    except Exception:                       # interpret mode / older runtimes
        phys = None
    if phys is not None and phys >= 96 * 1024 * 1024:
        limit = 96 * 1024 * 1024            # v5e/v6e: 128 MiB physical VMEM
    else:
        limit = _FALLBACK_VMEM_LIMIT        # v7x: 64 MiB per TensorCore
    return limit, (limit * 5) // 6          # ~1/6 headroom for compiler scratch


def _num_tensorcores():
    """Best-effort TensorCore count per chip (v7x: 2, v5e/v6e: 1)."""
    try:
        info = pltpu.get_tpu_info()
        for attr in ("num_cores", "tensorcore_count", "num_tensorcores",
                     "cores_per_chip"):
            v = getattr(info, attr, None)
            if isinstance(v, int) and v > 0:
                return v
    except Exception:
        pass
    try:
        if "v7" in jax.devices()[0].device_kind.lower():
            return 2
    except Exception:
        pass
    return 1


def _pick_tile_rows(rows, per_row_bytes, sublane, budget_bytes, num_cores):
    budget_rows = max(sublane, budget_bytes // max(per_row_bytes, 1))
    tile = min(1024, budget_rows, _round_up(rows, sublane))
    tile = max(sublane, (tile // sublane) * sublane)
    if num_cores > 1 and rows > sublane:
        # Keep the grid-step count a multiple of the TC count so both cores
        # stay busy on the last (possibly ragged) step. On 1-TC chips we
        # deliberately do NOT halve the tile (it only adds pipeline steps).
        steps = _round_up(max(num_cores, pl.cdiv(rows, tile)), num_cores)
        tile = max(sublane, _round_up(pl.cdiv(rows, steps), sublane))
    return tile


def layer_norm(x, alpha, bias, eps=1e-05, tile_rows=None):
    """x: (..., features). alpha, bias: (features,)."""
    orig_shape = x.shape
    features = orig_shape[-1]
    rows = math.prod(orig_shape[:-1])

    # Lane packing for features < 128: fold `groups` consecutive rows into the
    # lane axis (metadata-only reshape -> zero extra HBM traffic) so vregs,
    # HBM bursts and output stores are lane-dense.
    groups = 1
    if features < 128 and rows > 1:
        for g in range(min(128 // features, rows), 1, -1):
            if rows % g == 0:
                groups = g
                break
    # TODO(synk): when no divisor of `rows` exists (prime row counts) a padded
    # copy could still pay off for very small features; we fall back to the
    # unpacked (lane-masked) path rather than pay an extra HBM pass.
    width = groups * features
    rows_p = rows // groups

    x2d = x.reshape(rows_p, width)

    itemsize = jnp.dtype(x.dtype).itemsize
    sublane = max(8, 32 // itemsize)        # 8 rows f32, 16 bf16, 32 int8/fp8

    vmem_limit, tile_budget = _vmem_limits()
    # Dtype-aware per-row cost: double-buffered input + output blocks at the
    # native itemsize, plus ~3 full-width f32 temporaries in the body (kept at
    # 3, not 2, to leave VMEM headroom for very large feature dims).
    per_row_bytes = width * (4 * itemsize + 3 * 4)

    if tile_rows is None:
        tile_rows = _pick_tile_rows(rows_p, per_row_bytes, sublane,
                                    tile_budget, _num_tensorcores())
    else:
        tile_rows = max(sublane, (tile_rows // sublane) * sublane)

    f32 = jnp.float32
    alpha_row = jnp.tile(alpha.reshape(-1).astype(f32), groups).reshape(1, width)
    bias_row = jnp.tile(bias.reshape(-1).astype(f32), groups).reshape(1, width)
    # 0/1 segment matrix: column k selects the features of packed segment k.
    seg = (jnp.arange(width, dtype=jnp.int32)[:, None] // features
           == jnp.arange(groups, dtype=jnp.int32)[None, :]).astype(f32)
    segt = seg.T

    grid = (pl.cdiv(rows_p, tile_rows),)    # ragged last block is masked
    kernel = functools.partial(
        _layernorm_kernel,
        eps=float(eps),
        inv_f=1.0 / features,
        # torch.std over a single element is NaN (ddof=1); mirror that.
        inv_fm1=(1.0 / (features - 1)) if features > 1 else float("nan"),
        groups=groups)

    out = pl.pallas_call(
        kernel,
        out_shape=jax.ShapeDtypeStruct((rows_p, width), x.dtype),
        grid_spec=pltpu.PrefetchScalarGridSpec(
            num_scalar_prefetch=0,
            grid=grid,
            in_specs=[
                # TODO(synk): if a profile shows exposed input DMA for very
                # large `features`, add pipeline_mode=pl.Buffered(3) here only.
                pl.BlockSpec((tile_rows, width), lambda i: (i, 0)),
                pl.BlockSpec((width, groups), lambda i: (0, 0)),
                pl.BlockSpec((groups, width), lambda i: (0, 0)),
                pl.BlockSpec((1, width), lambda i: (0, 0)),
                pl.BlockSpec((1, width), lambda i: (0, 0)),
            ],
            out_specs=pl.BlockSpec((tile_rows, width), lambda i: (i, 0)),
        ),
        compiler_params=pltpu.CompilerParams(
            dimension_semantics=("parallel",),
            vmem_limit_bytes=vmem_limit,
        ),
    )(x2d, seg, segt, alpha_row, bias_row)

    return out.reshape(orig_shape)


def _reference(x, alpha, bias, eps=1e-05):
    x = x.astype(jnp.float32)
    mean = jnp.mean(x, axis=-1, keepdims=True)
    std = jnp.sqrt(
        jnp.sum((x - mean) ** 2, axis=-1, keepdims=True) / (x.shape[-1] - 1))
    return alpha.astype(jnp.float32) * (x - mean) / (std + eps) + bias.astype(
        jnp.float32)


if __name__ == "__main__":
    key = jax.random.PRNGKey(0)

    # 1) Lane-dense features (multiple of 128), f32, module-default params.
    batch, seq, hidden = 2, 8, 128
    x = jax.random.normal(key, (batch, seq, hidden), dtype=jnp.float32)
    alpha = jnp.ones((hidden,), dtype=jnp.float32)
    bias = jnp.zeros((hidden,), dtype=jnp.float32)
    out = jax.block_until_ready(layer_norm(x, alpha, bias, eps=1e-05))
    ref = _reference(x, alpha, bias, eps=1e-05)
    assert out.shape == x.shape and out.dtype == x.dtype
    assert jnp.max(jnp.abs(out - ref)) < 1e-4

    # 2) features < 128 with ragged rows -> lane-packing path (groups=3, W=96),
    #    non-trivial alpha/bias to exercise the tiled params.
    x2 = jax.random.normal(jax.random.PRNGKey(1), (3, 5, 32), dtype=jnp.float32)
    a2 = 0.5 + jnp.arange(32, dtype=jnp.float32) / 32.0
    b2 = jnp.arange(32, dtype=jnp.float32) / 64.0 - 0.25
    out2 = jax.block_until_ready(layer_norm(x2, a2, b2))
    assert out2.shape == x2.shape and out2.dtype == x2.dtype
    assert jnp.max(jnp.abs(out2 - _reference(x2, a2, b2))) < 1e-4

    # 3) bf16 input: dtype-aware sublane (16) and tile budget.
    x3 = jax.random.normal(jax.random.PRNGKey(2), (2, 8, 128),
                           dtype=jnp.bfloat16)
    out3 = jax.block_until_ready(layer_norm(x3, alpha, bias))
    assert out3.dtype == jnp.bfloat16
    assert jnp.max(jnp.abs(out3.astype(jnp.float32)
                           - _reference(x3, alpha, bias))) < 2e-2

    # 4) Multi-step grid with a masked ragged last block (explicit tile_rows).
    x4 = jax.random.normal(jax.random.PRNGKey(3), (5, 17, 256),
                           dtype=jnp.float32)
    a4 = 1.0 + jnp.arange(256, dtype=jnp.float32) / 512.0
    b4 = jnp.arange(256, dtype=jnp.float32) / 256.0
    out4 = jax.block_until_ready(layer_norm(x4, a4, b4, tile_rows=32))
    assert out4.shape == x4.shape
    assert jnp.max(jnp.abs(out4 - _reference(x4, a4, b4))) < 1e-4

    print("KERNEL_OK")
</pallas_src>

<mosaic_0001>
module attributes {stable_mosaic.version = 11 : i64} {
  func.func @_layernorm_kernel(%arg0: i32, %arg1: memref<16x128xf32, #tpu.memory_space<vmem>>, %arg2: memref<128x1xf32, #tpu.memory_space<vmem>>, %arg3: memref<1x128xf32, #tpu.memory_space<vmem>>, %arg4: memref<1x128xf32, #tpu.memory_space<vmem>>, %arg5: memref<1x128xf32, #tpu.memory_space<vmem>>, %arg6: memref<16x128xf32, #tpu.memory_space<vmem>>) attributes {dimension_semantics = [#tpu.dimension_semantics<parallel>], iteration_bounds = array<i64: 1>, scalar_prefetch = 0 : i64, scratch_operands = 0 : i64, tpu.core_type = #tpu.core_type<tc>, window_params = [{transform_indices = @transform_0, window_bounds = array<i64: 16, 128>}, {pipeline_mode = #tpu.pipeline_mode<synchronous>, transform_indices = @transform_1, window_bounds = array<i64: 128, 1>}, {pipeline_mode = #tpu.pipeline_mode<synchronous>, transform_indices = @transform_2, window_bounds = array<i64: 1, 128>}, {pipeline_mode = #tpu.pipeline_mode<synchronous>, transform_indices = @transform_3, window_bounds = array<i64: 1, 128>}, {pipeline_mode = #tpu.pipeline_mode<synchronous>, transform_indices = @transform_4, window_bounds = array<i64: 1, 128>}, {transform_indices = @transform_5, window_bounds = array<i64: 16, 128>}]} {
    %c0 = arith.constant 0 : index
    %c0_0 = arith.constant 0 : index
    %0 = vector.load %arg1[%c0, %c0_0] : memref<16x128xf32, #tpu.memory_space<vmem>>, vector<16x128xf32>
    %c0_1 = arith.constant 0 : index
    %c0_2 = arith.constant 0 : index
    %1 = vector.load %arg2[%c0_1, %c0_2] : memref<128x1xf32, #tpu.memory_space<vmem>>, vector<128x1xf32>
    %cst = arith.constant dense<0.000000e+00> : vector<16x1xf32>
    %2 = tpu.matmul %0, %1, %cst {dimension_numbers = #tpu.dot_dimension_numbers<[1], [0], [0], [1], [0, 0, 1, 1], [], []>, precision = #tpu.contract_precision<fp32>} : vector<16x128xf32>, vector<128x1xf32>, vector<16x1xf32> -> vector<16x1xf32>
    %cst_3 = arith.constant 7.812500e-03 : f32
    %3 = vector.broadcast %cst_3 : f32 to vector<16x1xf32>
    %4 = arith.mulf %2, %3 : vector<16x1xf32>
    %5 = vector.broadcast %4 : vector<16x1xf32> to vector<16x128xf32>
    %6 = arith.subf %0, %5 : vector<16x128xf32>
    %7 = arith.mulf %6, %6 : vector<16x128xf32>
    %cst_4 = arith.constant dense<0.000000e+00> : vector<16x1xf32>
    %8 = tpu.matmul %7, %1, %cst_4 {dimension_numbers = #tpu.dot_dimension_numbers<[1], [0], [0], [1], [0, 0, 1, 1], [], []>, precision = #tpu.contract_precision<fp32>} : vector<16x128xf32>, vector<128x1xf32>, vector<16x1xf32> -> vector<16x1xf32>
    %cst_5 = arith.constant 0.00787401571 : f32
    %9 = vector.broadcast %cst_5 : f32 to vector<16x1xf32>
    %10 = arith.mulf %8, %9 : vector<16x1xf32>
    %11 = math.sqrt %10 : vector<16x1xf32>
    %cst_6 = arith.constant 9.99999974E-6 : f32
    %12 = vector.broadcast %cst_6 : f32 to vector<16x1xf32>
    %13 = arith.addf %11, %12 : vector<16x1xf32>
    %14 = tpu.reciprocal %13 {approx = true} : vector<16x1xf32> -> vector<16x1xf32>
    %15 = arith.mulf %13, %14 : vector<16x1xf32>
    %cst_7 = arith.constant 2.000000e+00 : f32
    %16 = vector.broadcast %cst_7 : f32 to vector<16x1xf32>
    %17 = arith.subf %16, %15 : vector<16x1xf32>
    %18 = arith.mulf %14, %17 : vector<16x1xf32>
    %c0_8 = arith.constant 0 : index
    %c0_9 = arith.constant 0 : index
    %19 = vector.load %arg4[%c0_8, %c0_9] : memref<1x128xf32, #tpu.memory_space<vmem>>, vector<1x128xf32>
    %20 = vector.broadcast %18 : vector<16x1xf32> to vector<16x128xf32>
    %21 = arith.mulf %6, %20 : vector<16x128xf32>
    %22 = vector.broadcast %19 : vector<1x128xf32> to vector<16x128xf32>
    %23 = arith.mulf %22, %21 : vector<16x128xf32>
    %c0_10 = arith.constant 0 : index
    %c0_11 = arith.constant 0 : index
    %24 = vector.load %arg5[%c0_10, %c0_11] : memref<1x128xf32, #tpu.memory_space<vmem>>, vector<1x128xf32>
    %25 = vector.broadcast %24 : vector<1x128xf32> to vector<16x128xf32>
    %26 = arith.addf %23, %25 : vector<16x128xf32>
    %c0_12 = arith.constant 0 : index
    %c0_13 = arith.constant 0 : index
    %27 = vector.load %arg6[%c0_12, %c0_13] : memref<16x128xf32, #tpu.memory_space<vmem>>, vector<16x128xf32>
    tpu.vector_store %arg6[%c0_12, %c0_13], %26 {strides = array<i32>} : memref<16x128xf32, #tpu.memory_space<vmem>>, vector<16x128xf32>,
    return
  }
  func.func @transform_0(%arg0: i32) -> (i32, i32) {
    %c0_i32 = arith.constant 0 : i32
    %c0_i32_0 = arith.constant 0 : i32
    return %arg0, %c0_i32 : i32, i32
  }
  func.func @transform_1(%arg0: i32) -> (i32, i32) {
    %c0_i32 = arith.constant 0 : i32
    %c0_i32_0 = arith.constant 0 : i32
    %c0_i32_1 = arith.constant 0 : i32
    return %c0_i32, %c0_i32_0 : i32, i32
  }
  func.func @transform_2(%arg0: i32) -> (i32, i32) {
    %c0_i32 = arith.constant 0 : i32
    %c0_i32_0 = arith.constant 0 : i32
    %c0_i32_1 = arith.constant 0 : i32
    return %c0_i32, %c0_i32_0 : i32, i32
  }
  func.func @transform_3(%arg0: i32) -> (i32, i32) {
    %c0_i32 = arith.constant 0 : i32
    %c0_i32_0 = arith.constant 0 : i32
    %c0_i32_1 = arith.constant 0 : i32
    return %c0_i32, %c0_i32_0 : i32, i32
  }
  func.func @transform_4(%arg0: i32) -> (i32, i32) {
    %c0_i32 = arith.constant 0 : i32
    %c0_i32_0 = arith.constant 0 : i32
    %c0_i32_1 = arith.constant 0 : i32
    return %c0_i32, %c0_i32_0 : i32, i32
  }
  func.func @transform_5(%arg0: i32) -> (i32, i32) {
    %c0_i32 = arith.constant 0 : i32
    %c0_i32_0 = arith.constant 0 : i32
    return %arg0, %c0_i32 : i32, i32
  }
}

</mosaic_0001>

<llo_original>
// kernel: tpu_custom_call.1
$region0: #{tpu_custom_call.1}
  #allocation0 [shape = 'u32[]', space=smem, size = 0x4, offset = 0x4, fixed_abs, tag = 'smem constant byte address 0x4 - core index']
  #allocation1 [shape = 'u32[144,128]{1,0:T(1,128)}', space=vmem, size = 0x12000, scoped, tag = 'internal scratch']
  %s0 = inlined_call_operand.vmem [shape: f32[16,128], index: 0, kind: input, shape index: {}]
  %s1 = inlined_call_operand.vmem [shape: f32[128,1], index: 1, kind: input, shape index: {}]
  %s2 = inlined_call_operand.vmem [shape: f32[1,128], index: 2, kind: input, shape index: {}]
  %s3 = inlined_call_operand.vmem [shape: f32[1,128], index: 3, kind: input, shape index: {}]
  %s4 = inlined_call_operand.vmem [shape: f32[1,128], index: 4, kind: input, shape index: {}]
  %s5 = inlined_call_operand.hbm [shape: f32[16,128], index: 5, kind: output, shape index: {}]
  %s6 = sld [smem:[#allocation0]]
  $region30: #{tpu_custom_call.1} parent=0
    _
  %s8 = ssub.s32 1, %s6
  %s9 = scalar_select 0, %s8, %s6
  $region1: #{tpu_custom_call.1} parent=0
    #allocation2 [shape = 'u8[8192]{0}', space=vmem, size = 0x2000, scoped, tag = 'output window, operand 0, single buffered']
    #allocation3 [shape = 's32[1]{0}', space=sflag, size = 0x4, scoped, tag = 'scoped memory for tpu_custom_call.1']
    %10 = vsyncpa [#allocation3], 0
    // Predicated region
    $region2: #{tpu_custom_call.1} parent=1 // pred_check
      _
    $region3: #{tpu_custom_call.1} parent=1 // pred_check_branch
      %12 = sbr.rel (0) target = $region5
    $region4: #{tpu_custom_call.1} parent=1 // pred_region
      _
    $region5: #{tpu_custom_call.1} parent=1 // pred_fallthru
      _
    // Predicated region
    $region6: #{tpu_custom_call.1} parent=1 // pred_check
      _
    $region7: #{tpu_custom_call.1} parent=1 // pred_check_branch
      %14 = sbr.rel (0) target = $region9
    $region8: #{tpu_custom_call.1} parent=1 // pred_region
      _
    $region9: #{tpu_custom_call.1} parent=1 // pred_fallthru
      _
    // Predicated region
    $region10: #{tpu_custom_call.1} parent=1 // pred_check
      _
    $region11: #{tpu_custom_call.1} parent=1 // pred_check_branch
      %16 = sbr.rel (0) target = $region13
    $region12: #{tpu_custom_call.1} parent=1 // pred_region
      _
    $region13: #{tpu_custom_call.1} parent=1 // pred_fallthru
      _
    // Predicated region
    $region14: #{tpu_custom_call.1} parent=1 // pred_check
      _
    $region15: #{tpu_custom_call.1} parent=1 // pred_check_branch
      %18 = sbr.rel (0) target = $region17
    $region16: #{tpu_custom_call.1} parent=1 // pred_region
      _
    $region17: #{tpu_custom_call.1} parent=1 // pred_fallthru
      _
    // Predicated region
    $region18: #{tpu_custom_call.1} parent=1 // pred_check
      _
    $region19: #{tpu_custom_call.1} parent=1 // pred_check_branch
      %20 = sbr.rel (0) target = $region21
    $region20: #{tpu_custom_call.1} parent=1 // pred_region
      _
    $region21: #{tpu_custom_call.1} parent=1 // pred_fallthru
      _
    %v21 = vld [vmem:[%s0] sm:$0xff]
    %v22 = vld [vmem:[%s0 + $0x8] sm:$0xff]
    %v23 = vld [vmem:[%s1] sm:$0xff]
    %v24 = vld [vmem:[%s1 + $0x8] sm:$0xff]
    %v25 = vld [vmem:[%s1 + $0x10] sm:$0xff]
    %v26 = vld [vmem:[%s1 + $0x18] sm:$0xff]
    %v27 = vld [vmem:[%s1 + $0x20] sm:$0xff]
    %v28 = vld [vmem:[%s1 + $0x28] sm:$0xff]
    %v29 = vld [vmem:[%s1 + $0x30] sm:$0xff]
    %v30 = vld [vmem:[%s1 + $0x38] sm:$0xff]
    %v31 = vld [vmem:[%s1 + $0x40] sm:$0xff]
    %v32 = vld [vmem:[%s1 + $0x48] sm:$0xff]
    %v33 = vld [vmem:[%s1 + $0x50] sm:$0xff]
    %v34 = vld [vmem:[%s1 + $0x58] sm:$0xff]
    %v35 = vld [vmem:[%s1 + $0x60] sm:$0xff]
    %v36 = vld [vmem:[%s1 + $0x68] sm:$0xff]
    %v37 = vld [vmem:[%s1 + $0x70] sm:$0xff]
    %v38 = vld [vmem:[%s1 + $0x78] sm:$0xff]
    %39 = vmatprep.subr.mxu0 0.0
    %v40 = vand.u32 %v23, 4294901760
    %41 = vmatpush1.msra.mxu0 %v40
    %42 = vmatprep.subr.mxu0 0.0
    %v43 = vand.u32 %v24, 4294901760
    %44 = vmatpush1.msra.mxu0 %v43
    %45 = vmatprep.subr.mxu0 0.0
    %v46 = vand.u32 %v25, 4294901760
    %47 = vmatpush1.msra.mxu0 %v46
    %48 = vmatprep.subr.mxu0 0.0
    %v49 = vand.u32 %v26, 4294901760
    %50 = vmatpush1.msra.mxu0 %v49
    %51 = vmatprep.subr.mxu0 0.0
    %v52 = vand.u32 %v27, 4294901760
    %53 = vmatpush1.msra.mxu0 %v52
    %54 = vmatprep.subr.mxu0 0.0
    %v55 = vand.u32 %v28, 4294901760
    %56 = vmatpush1.msra.mxu0 %v55
    %57 = vmatprep.subr.mxu0 0.0
    %v58 = vand.u32 %v29, 4294901760
    %59 = vmatpush1.msra.mxu0 %v58
    %60 = vmatprep.subr.mxu0 0.0
    %v61 = vand.u32 %v30, 4294901760
    %62 = vmatpush1.msra.mxu0 %v61
    %63 = vmatprep.subr.mxu0 0.0
    %v64 = vand.u32 %v31, 4294901760
    %65 = vmatpush1.msra.mxu0 %v64
    %66 = vmatprep.subr.mxu0 0.0
    %v67 = vand.u32 %v32, 4294901760
    %68 = vmatpush1.msra.mxu0 %v67
    %69 = vmatprep.subr.mxu0 0.0
    %v70 = vand.u32 %v33, 4294901760
    %71 = vmatpush1.msra.mxu0 %v70
    %72 = vmatprep.subr.mxu0 0.0
    %v73 = vand.u32 %v34, 4294901760
    %74 = vmatpush1.msra.mxu0 %v73
    %75 = vmatprep.subr.mxu0 0.0
    %v76 = vand.u32 %v35, 4294901760
    %77 = vmatpush1.msra.mxu0 %v76
    %78 = vmatprep.subr.mxu0 0.0
    %v79 = vand.u32 %v36, 4294901760
    %80 = vmatpush1.msra.mxu0 %v79
    %81 = vmatprep.subr.mxu0 0.0
    %v82 = vand.u32 %v37, 4294901760
    %83 = vmatpush1.msra.mxu0 %v82
    %84 = vmatprep.subr.mxu0 0.0
    %v85 = vand.u32 %v38, 4294901760
    %86 = vmatpush1.msra.mxu0 %v85
    %87 = vmatprep.subr.mxu0 0.0
    %88 = vmatpush1.msra.mxu0 0.0
    %89 = vmatprep.subr.mxu0 0.0
    %90 = vmatpush1.msra.mxu0 0.0
    %91 = vmatprep.subr.mxu0 0.0
    %92 = vmatpush1.msra.mxu0 0.0
    %93 = vmatprep.subr.mxu0 0.0
    %94 = vmatpush1.msra.mxu0 0.0
    %95 = vmatprep.subr.mxu0 0.0
    %96 = vmatpush1.msra.mxu0 0.0
    %97 = vmatprep.subr.mxu0 0.0
    %98 = vmatpush1.msra.mxu0 0.0
    %99 = vmatprep.subr.mxu0 0.0
    %100 = vmatpush1.msra.mxu0 0.0
    %101 = vmatprep.subr.mxu0 0.0
    %102 = vmatpush1.msra.mxu0 0.0
    %103 = vmatprep.subr.mxu0 0.0
    %104 = vmatpush1.msra.mxu0 0.0
    %105 = vmatprep.subr.mxu0 0.0
    %106 = vmatpush1.msra.mxu0 0.0
    %107 = vmatprep.subr.mxu0 0.0
    %108 = vmatpush1.msra.mxu0 0.0
    %109 = vmatprep.subr.mxu0 0.0
    %110 = vmatpush1.msra.mxu0 0.0
    %111 = vmatprep.subr.mxu0 0.0
    %112 = vmatpush1.msra.mxu0 0.0
    %113 = vmatprep.subr.mxu0 0.0
    %114 = vmatpush1.msra.mxu0 0.0
    %115 = vmatprep.subr.mxu0 0.0
    %116 = vmatpush1.msra.mxu0 0.0
    %117 = vmatprep.subr.mxu0 0.0
    %118 = vmatpush1.msra.mxu0 0.0
    %119 = vmatprep.mubr.f32.mxu0 0.0
    %v120 = vand.u32 %v21, 4294901760
    %v121 = vsub.f32 %v21, %v120
    %v122 = vand.u32 %v121, 4294901760
    %v123 = vsub.f32 %v121, %v122
    %v124 = vand.u32 %v123, 4294901760
    %125 = vmatmul.mubr.f32.gmra.mrb[0].mxu0 %v124
    %v126 = vpop.f32.mrb[0].mxu0
    %v127 = vadd.f32 0.0, %v126
    %v128 = vpop.f32.mrb[0].mxu0
    %129 = vmatprep.mubr.f32.mxu0 0.0
    %v130 = vand.u32 %v22, 4294901760
    %v131 = vsub.f32 %v22, %v130
    %v132 = vand.u32 %v131, 4294901760
    %v133 = vsub.f32 %v131, %v132
    %v134 = vand.u32 %v133, 4294901760
    %135 = vmatmul.mubr.f32.gmra.mrb[0].mxu0 %v134
    %v136 = vpop.f32.mrb[0].mxu0
    %v137 = vadd.f32 0.0, %v136
    %v138 = vpop.f32.mrb[0].mxu0
    %139 = vdwg.mxu0
    %140 = vmatprep.subr.mxu0 0.0
    %v141 = vand.u32 %v23, 4294901760
    %v142 = vsub.f32 %v23, %v141
    %v143 = vand.u32 %v142, 4294901760
    %v144 = vsub.f32 %v142, %v143
    %v145 = vand.u32 %v144, 4294901760
    %146 = vmatpush1.msra.mxu0 %v145
    %147 = vmatprep.subr.mxu0 0.0
    %v148 = vand.u32 %v24, 4294901760
    %v149 = vsub.f32 %v24, %v148
    %v150 = vand.u32 %v149, 4294901760
    %v151 = vsub.f32 %v149, %v150
    %v152 = vand.u32 %v151, 4294901760
    %153 = vmatpush1.msra.mxu0 %v152
    %154 = vmatprep.subr.mxu0 0.0
    %v155 = vand.u32 %v25, 4294901760
    %v156 = vsub.f32 %v25, %v155
    %v157 = vand.u32 %v156, 4294901760
    %v158 = vsub.f32 %v156, %v157
    %v159 = vand.u32 %v158, 4294901760
    %160 = vmatpush1.msra.mxu0 %v159
    %161 = vmatprep.subr.mxu0 0.0
    %v162 = vand.u32 %v26, 4294901760
    %v163 = vsub.f32 %v26, %v162
    %v164 = vand.u32 %v163, 4294901760
    %v165 = vsub.f32 %v163, %v164
    %v166 = vand.u32 %v165, 4294901760
    %167 = vmatpush1.msra.mxu0 %v166
    %168 = vmatprep.subr.mxu0 0.0
    %v169 = vand.u32 %v27, 4294901760
    %v170 = vsub.f32 %v27, %v169
    %v171 = vand.u32 %v170, 4294901760
    %v172 = vsub.f32 %v170, %v171
    %v173 = vand.u32 %v172, 4294901760
    %174 = vmatpush1.msra.mxu0 %v173
    %175 = vmatprep.subr.mxu0 0.0
    %v176 = vand.u32 %v28, 4294901760
    %v177 = vsub.f32 %v28, %v176
    %v178 = vand.u32 %v177, 4294901760
    %v179 = vsub.f32 %v177, %v178
    %v180 = vand.u32 %v179, 4294901760
    %181 = vmatpush1.msra.mxu0 %v180
    %182 = vmatprep.subr.mxu0 0.0
    %v183 = vand.u32 %v29, 4294901760
    %v184 = vsub.f32 %v29, %v183
    %v185 = vand.u32 %v184, 4294901760
    %v186 = vsub.f32 %v184, %v185
    %v187 = vand.u32 %v186, 4294901760
    %188 = vmatpush1.msra.mxu0 %v187
    %189 = vmatprep.subr.mxu0 0.0
    %v190 = vand.u32 %v30, 4294901760
    %v191 = vsub.f32 %v30, %v190
    %v192 = vand.u32 %v191, 4294901760
    %v193 = vsub.f32 %v191, %v192
    %v194 = vand.u32 %v193, 4294901760
    %195 = vmatpush1.msra.mxu0 %v194
    %196 = vmatprep.subr.mxu0 0.0
    %v197 = vand.u32 %v31, 4294901760
    %v198 = vsub.f32 %v31, %v197
    %v199 = vand.u32 %v198, 4294901760
    %v200 = vsub.f32 %v198, %v199
    %v201 = vand.u32 %v200, 4294901760
    %202 = vmatpush1.msra.mxu0 %v201
    %203 = vmatprep.subr.mxu0 0.0
    %v204 = vand.u32 %v32, 4294901760
    %v205 = vsub.f32 %v32, %v204
    %v206 = vand.u32 %v205, 4294901760
    %v207 = vsub.f32 %v205, %v206
    %v208 = vand.u32 %v207, 4294901760
    %209 = vmatpush1.msra.mxu0 %v208
    %210 = vmatprep.subr.mxu0 0.0
    %v211 = vand.u32 %v33, 4294901760
    %v212 = vsub.f32 %v33, %v211
    %v213 = vand.u32 %v212, 4294901760
    %v214 = vsub.f32 %v212, %v213
    %v215 = vand.u32 %v214, 4294901760
    %216 = vmatpush1.msra.mxu0 %v215
    %217 = vmatprep.subr.mxu0 0.0
    %v218 = vand.u32 %v34, 4294901760
    %v219 = vsub.f32 %v34, %v218
    %v220 = vand.u32 %v219, 4294901760
    %v221 = vsub.f32 %v219, %v220
    %v222 = vand.u32 %v221, 4294901760
    %223 = vmatpush1.msra.mxu0 %v222
    %224 = vmatprep.subr.mxu0 0.0
    %v225 = vand.u32 %v35, 4294901760
    %v226 = vsub.f32 %v35, %v225
    %v227 = vand.u32 %v226, 4294901760
    %v228 = vsub.f32 %v226, %v227
    %v229 = vand.u32 %v228, 4294901760
    %230 = vmatpush1.msra.mxu0 %v229
    %231 = vmatprep.subr.mxu0 0.0
    %v232 = vand.u32 %v36, 4294901760
    %v233 = vsub.f32 %v36, %v232
    %v234 = vand.u32 %v233, 4294901760
    %v235 = vsub.f32 %v233, %v234
    %v236 = vand.u32 %v235, 4294901760
    %237 = vmatpush1.msra.mxu0 %v236
    %238 = vmatprep.subr.mxu0 0.0
    %v239 = vand.u32 %v37, 4294901760
    %v240 = vsub.f32 %v37, %v239
    %v241 = vand.u32 %v240, 4294901760
    %v242 = vsub.f32 %v240, %v241
    %v243 = vand.u32 %v242, 4294901760
    %244 = vmatpush1.msra.mxu0 %v243
    %245 = vmatprep.subr.mxu0 0.0
    %v246 = vand.u32 %v38, 4294901760
    %v247 = vsub.f32 %v38, %v246
    %v248 = vand.u32 %v247, 4294901760
    %v249 = vsub.f32 %v247, %v248
    %v250 = vand.u32 %v249, 4294901760
    %251 = vmatpush1.msra.mxu0 %v250
    %252 = vmatprep.subr.mxu0 0.0
    %253 = vmatpush1.msra.mxu0 0.0
    %254 = vmatprep.subr.mxu0 0.0
    %255 = vmatpush1.msra.mxu0 0.0
    %256 = vmatprep.subr.mxu0 0.0
    %257 = vmatpush1.msra.mxu0 0.0
    %258 = vmatprep.subr.mxu0 0.0
    %259 = vmatpush1.msra.mxu0 0.0
    %260 = vmatprep.subr.mxu0 0.0
    %261 = vmatpush1.msra.mxu0 0.0
    %262 = vmatprep.subr.mxu0 0.0
    %263 = vmatpush1.msra.mxu0 0.0
    %264 = vmatprep.subr.mxu0 0.0
    %265 = vmatpush1.msra.mxu0 0.0
    %266 = vmatprep.subr.mxu0 0.0
    %267 = vmatpush1.msra.mxu0 0.0
    %268 = vmatprep.subr.mxu0 0.0
    %269 = vmatpush1.msra.mxu0 0.0
    %270 = vmatprep.subr.mxu0 0.0
    %271 = vmatpush1.msra.mxu0 0.0
    %272 = vmatprep.subr.mxu0 0.0
    %273 = vmatpush1.msra.mxu0 0.0
    %274 = vmatprep.subr.mxu0 0.0
    %275 = vmatpush1.msra.mxu0 0.0
    %276 = vmatprep.subr.mxu0 0.0
    %277 = vmatpush1.msra.mxu0 0.0
    %278 = vmatprep.subr.mxu0 0.0
    %279 = vmatpush1.msra.mxu0 0.0
    %280 = vmatprep.subr.mxu0 0.0
    %281 = vmatpush1.msra.mxu0 0.0
    %282 = vmatprep.subr.mxu0 0.0
    %283 = vmatpush1.msra.mxu0 0.0
    %284 = vmatprep.mubr.f32.mxu0 0.0
    %v285 = vand.u32 %v21, 4294901760
    %286 = vmatmul.mubr.f32.gmra.mrb[0].mxu0 %v285
    %v287 = vpop.f32.mrb[0].mxu0
    %v288 = vadd.f32 %v127, %v287
    %v289 = vpop.f32.mrb[0].mxu0
    %290 = vmatprep.mubr.f32.mxu0 0.0
    %v291 = vand.u32 %v22, 4294901760
    %292 = vmatmul.mubr.f32.gmra.mrb[0].mxu0 %v291
    %v293 = vpop.f32.mrb[0].mxu0
    %v294 = vadd.f32 %v137, %v293
    %v295 = vpop.f32.mrb[0].mxu0
    %296 = vdwg.mxu0
    %297 = vmatprep.subr.mxu0 0.0
    %v298 = vand.u32 %v23, 4294901760
    %v299 = vsub.f32 %v23, %v298
    %300 = vmatpush1.msra.mxu0 %v299
    %301 = vmatprep.subr.mxu0 0.0
    %v302 = vand.u32 %v24, 4294901760
    %v303 = vsub.f32 %v24, %v302
    %304 = vmatpush1.msra.mxu0 %v303
    %305 = vmatprep.subr.mxu0 0.0
    %v306 = vand.u32 %v25, 4294901760
    %v307 = vsub.f32 %v25, %v306
    %308 = vmatpush1.msra.mxu0 %v307
    %309 = vmatprep.subr.mxu0 0.0
    %v310 = vand.u32 %v26, 4294901760
    %v311 = vsub.f32 %v26, %v310
    %312 = vmatpush1.msra.mxu0 %v311
    %313 = vmatprep.subr.mxu0 0.0
    %v314 = vand.u32 %v27, 4294901760
    %v315 = vsub.f32 %v27, %v314
    %316 = vmatpush1.msra.mxu0 %v315
    %317 = vmatprep.subr.mxu0 0.0
    %v318 = vand.u32 %v28, 4294901760
    %v319 = vsub.f32 %v28, %v318
    %320 = vmatpush1.msra.mxu0 %v319
    %321 = vmatprep.subr.mxu0 0.0
    %v322 = vand.u32 %v29, 4294901760
    %v323 = vsub.f32 %v29, %v322
    %324 = vmatpush1.msra.mxu0 %v323
    %325 = vmatprep.subr.mxu0 0.0
    %v326 = vand.u32 %v30, 4294901760
    %v327 = vsub.f32 %v30, %v326
    %328 = vmatpush1.msra.mxu0 %v327
    %329 = vmatprep.subr.mxu0 0.0
    %v330 = vand.u32 %v31, 4294901760
    %v331 = vsub.f32 %v31, %v330
    %332 = vmatpush1.msra.mxu0 %v331
    %333 = vmatprep.subr.mxu0 0.0
    %v334 = vand.u32 %v32, 4294901760
    %v335 = vsub.f32 %v32, %v334
    %336 = vmatpush1.msra.mxu0 %v335
    %337 = vmatprep.subr.mxu0 0.0
    %v338 = vand.u32 %v33, 4294901760
    %v339 = vsub.f32 %v33, %v338
    %340 = vmatpush1.msra.mxu0 %v339
    %341 = vmatprep.subr.mxu0 0.0
    %v342 = vand.u32 %v34, 4294901760
    %v343 = vsub.f32 %v34, %v342
    %344 = vmatpush1.msra.mxu0 %v343
    %345 = vmatprep.subr.mxu0 0.0
    %v346 = vand.u32 %v35, 4294901760
    %v347 = vsub.f32 %v35, %v346
    %348 = vmatpush1.msra.mxu0 %v347
    %349 = vmatprep.subr.mxu0 0.0
    %v350 = vand.u32 %v36, 4294901760
    %v351 = vsub.f32 %v36, %v350
    %352 = vmatpush1.msra.mxu0 %v351
    %353 = vmatprep.subr.mxu0 0.0
    %v354 = vand.u32 %v37, 4294901760
    %v355 = vsub.f32 %v37, %v354
    %356 = vmatpush1.msra.mxu0 %v355
    %357 = vmatprep.subr.mxu0 0.0
    %v358 = vand.u32 %v38, 4294901760
    %v359 = vsub.f32 %v38, %v358
    %360 = vmatpush1.msra.mxu0 %v359
    %361 = vmatprep.subr.mxu0 0.0
    %362 = vmatpush1.msra.mxu0 0.0
    %363 = vmatprep.subr.mxu0 0.0
    %364 = vmatpush1.msra.mxu0 0.0
    %365 = vmatprep.subr.mxu0 0.0
    %366 = vmatpush1.msra.mxu0 0.0
    %367 = vmatprep.subr.mxu0 0.0
    %368 = vmatpush1.msra.mxu0 0.0
    %369 = vmatprep.subr.mxu0 0.0
    %370 = vmatpush1.msra.mxu0 0.0
    %371 = vmatprep.subr.mxu0 0.0
    %372 = vmatpush1.msra.mxu0 0.0
    %373 = vmatprep.subr.mxu0 0.0
    %374 = vmatpush1.msra.mxu0 0.0
    %375 = vmatprep.subr.mxu0 0.0
    %376 = vmatpush1.msra.mxu0 0.0
    %377 = vmatprep.subr.mxu0 0.0
    %378 = vmatpush1.msra.mxu0 0.0
    %379 = vmatprep.subr.mxu0 0.0
    %380 = vmatpush1.msra.mxu0 0.0
    %381 = vmatprep.subr.mxu0 0.0
    %382 = vmatpush1.msra.mxu0 0.0
    %383 = vmatprep.subr.mxu0 0.0
    %384 = vmatpush1.msra.mxu0 0.0
    %385 = vmatprep.subr.mxu0 0.0
    %386 = vmatpush1.msra.mxu0 0.0
    %387 = vmatprep.subr.mxu0 0.0
    %388 = vmatpush1.msra.mxu0 0.0
    %389 = vmatprep.subr.mxu0 0.0
    %390 = vmatpush1.msra.mxu0 0.0
    %391 = vmatprep.subr.mxu0 0.0
    %392 = vmatpush1.msra.mxu0 0.0
    %393 = vmatprep.mubr.f32.mxu0 0.0
    %v394 = vand.u32 %v21, 4294901760
    %v395 = vsub.f32 %v21, %v394
    %396 = vmatmul.mubr.f32.gmra.mrb[0].mxu0 %v395
    %v397 = vpop.f32.mrb[0].mxu0
    %v398 = vadd.f32 %v288, %v397
    %v399 = vpop.f32.mrb[0].mxu0
    %400 = vmatprep.mubr.f32.mxu0 0.0
    %v401 = vand.u32 %v22, 4294901760
    %v402 = vsub.f32 %v22, %v401
    %403 = vmatmul.mubr.f32.gmra.mrb[0].mxu0 %v402
    %v404 = vpop.f32.mrb[0].mxu0
    %v405 = vadd.f32 %v294, %v404
    %v406 = vpop.f32.mrb[0].mxu0
    %407 = vdwg.mxu0
    %408 = vmatprep.subr.mxu0 0.0
    %v409 = vand.u32 %v23, 4294901760
    %410 = vmatpush1.msra.mxu0 %v409
    %411 = vmatprep.subr.mxu0 0.0
    %v412 = vand.u32 %v24, 4294901760
    %413 = vmatpush1.msra.mxu0 %v412
    %414 = vmatprep.subr.mxu0 0.0
    %v415 = vand.u32 %v25, 4294901760
    %416 = vmatpush1.msra.mxu0 %v415
    %417 = vmatprep.subr.mxu0 0.0
    %v418 = vand.u32 %v26, 4294901760
    %419 = vmatpush1.msra.mxu0 %v418
    %420 = vmatprep.subr.mxu0 0.0
    %v421 = vand.u32 %v27, 4294901760
    %422 = vmatpush1.msra.mxu0 %v421
    %423 = vmatprep.subr.mxu0 0.0
    %v424 = vand.u32 %v28, 4294901760
    %425 = vmatpush1.msra.mxu0 %v424
    %426 = vmatprep.subr.mxu0 0.0
    %v427 = vand.u32 %v29, 4294901760
    %428 = vmatpush1.msra.mxu0 %v427
    %429 = vmatprep.subr.mxu0 0.0
    %v430 = vand.u32 %v30, 4294901760
    %431 = vmatpush1.msra.mxu0 %v430
    %432 = vmatprep.subr.mxu0 0.0
    %v433 = vand.u32 %v31, 4294901760
    %434 = vmatpush1.msra.mxu0 %v433
    %435 = vmatprep.subr.mxu0 0.0
    %v436 = vand.u32 %v32, 4294901760
    %437 = vmatpush1.msra.mxu0 %v436
    %438 = vmatprep.subr.mxu0 0.0
    %v439 = vand.u32 %v33, 4294901760
    %440 = vmatpush1.msra.mxu0 %v439
    %441 = vmatprep.subr.mxu0 0.0
    %v442 = vand.u32 %v34, 4294901760
    %443 = vmatpush1.msra.mxu0 %v442
    %444 = vmatprep.subr.mxu0 0.0
    %v445 = vand.u32 %v35, 4294901760
    %446 = vmatpush1.msra.mxu0 %v445
    %447 = vmatprep.subr.mxu0 0.0
    %v448 = vand.u32 %v36, 4294901760
    %449 = vmatpush1.msra.mxu0 %v448
    %450 = vmatprep.subr.mxu0 0.0
    %v451 = vand.u32 %v37, 4294901760
    %452 = vmatpush1.msra.mxu0 %v451
    %453 = vmatprep.subr.mxu0 0.0
    %v454 = vand.u32 %v38, 4294901760
    %455 = vmatpush1.msra.mxu0 %v454
    %456 = vmatprep.subr.mxu0 0.0
    %457 = vmatpush1.msra.mxu0 0.0
    %458 = vmatprep.subr.mxu0 0.0
    %459 = vmatpush1.msra.mxu0 0.0
    %460 = vmatprep.subr.mxu0 0.0
    %461 = vmatpush1.msra.mxu0 0.0
    %462 = vmatprep.subr.mxu0 0.0
    %463 = vmatpush1.msra.mxu0 0.0
    %464 = vmatprep.subr.mxu0 0.0
    %465 = vmatpush1.msra.mxu0 0.0
    %466 = vmatprep.subr.mxu0 0.0
    %467 = vmatpush1.msra.mxu0 0.0
    %468 = vmatprep.subr.mxu0 0.0
    %469 = vmatpush1.msra.mxu0 0.0
    %470 = vmatprep.subr.mxu0 0.0
    %471 = vmatpush1.msra.mxu0 0.0
    %472 = vmatprep.subr.mxu0 0.0
    %473 = vmatpush1.msra.mxu0 0.0
    %474 = vmatprep.subr.mxu0 0.0
    %475 = vmatpush1.msra.mxu0 0.0
    %476 = vmatprep.subr.mxu0 0.0
    %477 = vmatpush1.msra.mxu0 0.0
    %478 = vmatprep.subr.mxu0 0.0
    %479 = vmatpush1.msra.mxu0 0.0
    %480 = vmatprep.subr.mxu0 0.0
    %481 = vmatpush1.msra.mxu0 0.0
    %482 = vmatprep.subr.mxu0 0.0
    %483 = vmatpush1.msra.mxu0 0.0
    %484 = vmatprep.subr.mxu0 0.0
    %485 = vmatpush1.msra.mxu0 0.0
    %486 = vmatprep.subr.mxu0 0.0
    %487 = vmatpush1.msra.mxu0 0.0
    %488 = vmatprep.mubr.f32.mxu0 0.0
    %v489 = vand.u32 %v21, 4294901760
    %v490 = vsub.f32 %v21, %v489
    %v491 = vand.u32 %v490, 4294901760
    %492 = vmatmul.mubr.f32.gmra.mrb[0].mxu0 %v491
    %v493 = vpop.f32.mrb[0].mxu0
    %v494 = vadd.f32 %v398, %v493
    %v495 = vpop.f32.mrb[0].mxu0
    %496 = vmatprep.mubr.f32.mxu0 0.0
    %v497 = vand.u32 %v22, 4294901760
    %v498 = vsub.f32 %v22, %v497
    %v499 = vand.u32 %v498, 4294901760
    %500 = vmatmul.mubr.f32.gmra.mrb[0].mxu0 %v499
    %v501 = vpop.f32.mrb[0].mxu0
    %v502 = vadd.f32 %v405, %v501
    %v503 = vpop.f32.mrb[0].mxu0
    %504 = vdwg.mxu0
    %505 = vmatprep.subr.mxu0 0.0
    %v506 = vand.u32 %v23, 4294901760
    %v507 = vsub.f32 %v23, %v506
    %v508 = vand.u32 %v507, 4294901760
    %509 = vmatpush1.msra.mxu0 %v508
    %510 = vmatprep.subr.mxu0 0.0
    %v511 = vand.u32 %v24, 4294901760
    %v512 = vsub.f32 %v24, %v511
    %v513 = vand.u32 %v512, 4294901760
    %514 = vmatpush1.msra.mxu0 %v513
    %515 = vmatprep.subr.mxu0 0.0
    %v516 = vand.u32 %v25, 4294901760
    %v517 = vsub.f32 %v25, %v516
    %v518 = vand.u32 %v517, 4294901760
    %519 = vmatpush1.msra.mxu0 %v518
    %520 = vmatprep.subr.mxu0 0.0
    %v521 = vand.u32 %v26, 4294901760
    %v522 = vsub.f32 %v26, %v521
    %v523 = vand.u32 %v522, 4294901760
    %524 = vmatpush1.msra.mxu0 %v523
    %525 = vmatprep.subr.mxu0 0.0
    %v526 = vand.u32 %v27, 4294901760
    %v527 = vsub.f32 %v27, %v526
    %v528 = vand.u32 %v527, 4294901760
    %529 = vmatpush1.msra.mxu0 %v528
    %530 = vmatprep.subr.mxu0 0.0
    %v531 = vand.u32 %v28, 4294901760
    %v532 = vsub.f32 %v28, %v531
    %v533 = vand.u32 %v532, 4294901760
    %534 = vmatpush1.msra.mxu0 %v533
    %535 = vmatprep.subr.mxu0 0.0
    %v536 = vand.u32 %v29, 4294901760
    %v537 = vsub.f32 %v29, %v536
    %v538 = vand.u32 %v537, 4294901760
    %539 = vmatpush1.msra.mxu0 %v538
    %540 = vmatprep.subr.mxu0 0.0
    %v541 = vand.u32 %v30, 4294901760
    %v542 = vsub.f32 %v30, %v541
    %v543 = vand.u32 %v542, 4294901760
    %544 = vmatpush1.msra.mxu0 %v543
    %545 = vmatprep.subr.mxu0 0.0
    %v546 = vand.u32 %v31, 4294901760
    %v547 = vsub.f32 %v31, %v546
    %v548 = vand.u32 %v547, 4294901760
    %549 = vmatpush1.msra.mxu0 %v548
    %550 = vmatprep.subr.mxu0 0.0
    %v551 = vand.u32 %v32, 4294901760
    %v552 = vsub.f32 %v32, %v551
    %v553 = vand.u32 %v552, 4294901760
    %554 = vmatpush1.msra.mxu0 %v553
    %555 = vmatprep.subr.mxu0 0.0
    %v556 = vand.u32 %v33, 4294901760
    %v557 = vsub.f32 %v33, %v556
    %v558 = vand.u32 %v557, 4294901760
    %559 = vmatpush1.msra.mxu0 %v558
    %560 = vmatprep.subr.mxu0 0.0
    %v561 = vand.u32 %v34, 4294901760
    %v562 = vsub.f32 %v34, %v561
    %v563 = vand.u32 %v562, 4294901760
    %564 = vmatpush1.msra.mxu0 %v563
    %565 = vmatprep.subr.mxu0 0.0
    %v566 = vand.u32 %v35, 4294901760
    %v567 = vsub.f32 %v35, %v566
    %v568 = vand.u32 %v567, 4294901760
    %569 = vmatpush1.msra.mxu0 %v568
    %570 = vmatprep.subr.mxu0 0.0
    %v571 = vand.u32 %v36, 4294901760
    %v572 = vsub.f32 %v36, %v571
    %v573 = vand.u32 %v572, 4294901760
    %574 = vmatpush1.msra.mxu0 %v573
    %575 = vmatprep.subr.mxu0 0.0
    %v576 = vand.u32 %v37, 4294901760
    %v577 = vsub.f32 %v37, %v576
    %v578 = vand.u32 %v577, 4294901760
    %579 = vmatpush1.msra.mxu0 %v578
    %580 = vmatprep.subr.mxu0 0.0
    %v581 = vand.u32 %v38, 4294901760
    %v582 = vsub.f32 %v38, %v581
    %v583 = vand.u32 %v582, 4294901760
    %584 = vmatpush1.msra.mxu0 %v583
    %585 = vmatprep.subr.mxu0 0.0
    %586 = vmatpush1.msra.mxu0 0.0
    %587 = vmatprep.subr.mxu0 0.0
    %588 = vmatpush1.msra.mxu0 0.0
    %589 = vmatprep.subr.mxu0 0.0
    %590 = vmatpush1.msra.mxu0 0.0
    %591 = vmatprep.subr.mxu0 0.0
    %592 = vmatpush1.msra.mxu0 0.0
    %593 = vmatprep.subr.mxu0 0.0
    %594 = vmatpush1.msra.mxu0 0.0
    %595 = vmatprep.subr.mxu0 0.0
    %596 = vmatpush1.msra.mxu0 0.0
    %597 = vmatprep.subr.mxu0 0.0
    %598 = vmatpush1.msra.mxu0 0.0
    %599 = vmatprep.subr.mxu0 0.0
    %600 = vmatpush1.msra.mxu0 0.0
    %601 = vmatprep.subr.mxu0 0.0
    %602 = vmatpush1.msra.mxu0 0.0
    %603 = vmatprep.subr.mxu0 0.0
    %604 = vmatpush1.msra.mxu0 0.0
    %605 = vmatprep.subr.mxu0 0.0
    %606 = vmatpush1.msra.mxu0 0.0
    %607 = vmatprep.subr.mxu0 0.0
    %608 = vmatpush1.msra.mxu0 0.0
    %609 = vmatprep.subr.mxu0 0.0
    %610 = vmatpush1.msra.mxu0 0.0
    %611 = vmatprep.subr.mxu0 0.0
    %612 = vmatpush1.msra.mxu0 0.0
    %613 = vmatprep.subr.mxu0 0.0
    %614 = vmatpush1.msra.mxu0 0.0
    %615 = vmatprep.subr.mxu0 0.0
    %616 = vmatpush1.msra.mxu0 0.0
    %617 = vmatprep.mubr.f32.mxu0 0.0
    %v618 = vand.u32 %v21, 4294901760
    %619 = vmatmul.mubr.f32.gmra.mrb[0].mxu0 %v618
    %v620 = vpop.f32.mrb[0].mxu0
    %v621 = vadd.f32 %v494, %v620
    %v622 = vpop.f32.mrb[0].mxu0
    %623 = vmatprep.mubr.f32.mxu0 0.0
    %v624 = vand.u32 %v22, 4294901760
    %625 = vmatmul.mubr.f32.gmra.mrb[0].mxu0 %v624
    %v626 = vpop.f32.mrb[0].mxu0
    %v627 = vadd.f32 %v502, %v626
    %v628 = vpop.f32.mrb[0].mxu0
    %629 = vdwg.mxu0
    %630 = vmatprep.subr.mxu0 0.0
    %v631 = vand.u32 %v23, 4294901760
    %632 = vmatpush1.msra.mxu0 %v631
    %633 = vmatprep.subr.mxu0 0.0
    %v634 = vand.u32 %v24, 4294901760
    %635 = vmatpush1.msra.mxu0 %v634
    %636 = vmatprep.subr.mxu0 0.0
    %v637 = vand.u32 %v25, 4294901760
    %638 = vmatpush1.msra.mxu0 %v637
    %639 = vmatprep.subr.mxu0 0.0
    %v640 = vand.u32 %v26, 4294901760
    %641 = vmatpush1.msra.mxu0 %v640
    %642 = vmatprep.subr.mxu0 0.0
    %v643 = vand.u32 %v27, 4294901760
    %644 = vmatpush1.msra.mxu0 %v643
    %645 = vmatprep.subr.mxu0 0.0
    %v646 = vand.u32 %v28, 4294901760
    %647 = vmatpush1.msra.mxu0 %v646
    %648 = vmatprep.subr.mxu0 0.0
    %v649 = vand.u32 %v29, 4294901760
    %650 = vmatpush1.msra.mxu0 %v649
    %651 = vmatprep.subr.mxu0 0.0
    %v652 = vand.u32 %v30, 4294901760
    %653 = vmatpush1.msra.mxu0 %v652
    %654 = vmatprep.subr.mxu0 0.0
    %v655 = vand.u32 %v31, 4294901760
    %656 = vmatpush1.msra.mxu0 %v655
    %657 = vmatprep.subr.mxu0 0.0
    %v658 = vand.u32 %v32, 4294901760
    %659 = vmatpush1.msra.mxu0 %v658
    %660 = vmatprep.subr.mxu0 0.0
    %v661 = vand.u32 %v33, 4294901760
    %662 = vmatpush1.msra.mxu0 %v661
    %663 = vmatprep.subr.mxu0 0.0
    %v664 = vand.u32 %v34, 4294901760
    %665 = vmatpush1.msra.mxu0 %v664
    %666 = vmatprep.subr.mxu0 0.0
    %v667 = vand.u32 %v35, 4294901760
    %668 = vmatpush1.msra.mxu0 %v667
    %669 = vmatprep.subr.mxu0 0.0
    %v670 = vand.u32 %v36, 4294901760
    %671 = vmatpush1.msra.mxu0 %v670
    %672 = vmatprep.subr.mxu0 0.0
    %v673 = vand.u32 %v37, 4294901760
    %674 = vmatpush1.msra.mxu0 %v673
    %675 = vmatprep.subr.mxu0 0.0
    %v676 = vand.u32 %v38, 4294901760
    %677 = vmatpush1.msra.mxu0 %v676
    %678 = vmatprep.subr.mxu0 0.0
    %679 = vmatpush1.msra.mxu0 0.0
    %680 = vmatprep.subr.mxu0 0.0
    %681 = vmatpush1.msra.mxu0 0.0
    %682 = vmatprep.subr.mxu0 0.0
    %683 = vmatpush1.msra.mxu0 0.0
    %684 = vmatprep.subr.mxu0 0.0
    %685 = vmatpush1.msra.mxu0 0.0
    %686 = vmatprep.subr.mxu0 0.0
    %687 = vmatpush1.msra.mxu0 0.0
    %688 = vmatprep.subr.mxu0 0.0
    %689 = vmatpush1.msra.mxu0 0.0
    %690 = vmatprep.subr.mxu0 0.0
    %691 = vmatpush1.msra.mxu0 0.0
    %692 = vmatprep.subr.mxu0 0.0
    %693 = vmatpush1.msra.mxu0 0.0
    %694 = vmatprep.subr.mxu0 0.0
    %695 = vmatpush1.msra.mxu0 0.0
    %696 = vmatprep.subr.mxu0 0.0
    %697 = vmatpush1.msra.mxu0 0.0
    %698 = vmatprep.subr.mxu0 0.0
    %699 = vmatpush1.msra.mxu0 0.0
    %700 = vmatprep.subr.mxu0 0.0
    %701 = vmatpush1.msra.mxu0 0.0
    %702 = vmatprep.subr.mxu0 0.0
    %703 = vmatpush1.msra.mxu0 0.0
    %704 = vmatprep.subr.mxu0 0.0
    %705 = vmatpush1.msra.mxu0 0.0
    %706 = vmatprep.subr.mxu0 0.0
    %707 = vmatpush1.msra.mxu0 0.0
    %708 = vmatprep.subr.mxu0 0.0
    %709 = vmatpush1.msra.mxu0 0.0
    %710 = vmatprep.mubr.f32.mxu0 0.0
    %v711 = vand.u32 %v21, 4294901760
    %712 = vmatmul.mubr.f32.gmra.mrb[0].mxu0 %v711
    %v713 = vpop.f32.mrb[0].mxu0
    %v714 = vadd.f32 %v621, %v713
    %v715 = vpop.f32.mrb[0].mxu0
    %716 = vmatprep.mubr.f32.mxu0 0.0
    %v717 = vand.u32 %v22, 4294901760
    %718 = vmatmul.mubr.f32.gmra.mrb[0].mxu0 %v717
    %v719 = vpop.f32.mrb[0].mxu0
    %v720 = vadd.f32 %v627, %v719
    %v721 = vpop.f32.mrb[0].mxu0
    %722 = vdwg.mxu0
    %v723 = vmul.f32 %v714, 0.0078125
    %v724 = vmul.f32 %v720, 0.0078125
    %726 = vset.pattern.permute.xlu0 0
    %727 = vperm.xlu0 %726, %v723
    %v728 = vpop.permute.xlu0 %727
    %731 = vset.pattern.permute.xlu0 0
    %732 = vperm.xlu0 %731, %v724
    %v733 = vpop.permute.xlu0 %732
    %v735 = vsub.f32 %v21, %v728
    %v736 = vsub.f32 %v22, %v733
    %v737 = vmul.f32 %v735, %v735
    %v738 = vmul.f32 %v736, %v736
    %739 = vmatprep.subr.mxu0 0.0
    %v740 = vand.u32 %v23, 4294901760
    %741 = vmatpush1.msra.mxu0 %v740
    %742 = vmatprep.subr.mxu0 0.0
    %v743 = vand.u32 %v24, 4294901760
    %744 = vmatpush1.msra.mxu0 %v743
    %745 = vmatprep.subr.mxu0 0.0
    %v746 = vand.u32 %v25, 4294901760
    %747 = vmatpush1.msra.mxu0 %v746
    %748 = vmatprep.subr.mxu0 0.0
    %v749 = vand.u32 %v26, 4294901760
    %750 = vmatpush1.msra.mxu0 %v749
    %751 = vmatprep.subr.mxu0 0.0
    %v752 = vand.u32 %v27, 4294901760
    %753 = vmatpush1.msra.mxu0 %v752
    %754 = vmatprep.subr.mxu0 0.0
    %v755 = vand.u32 %v28, 4294901760
    %756 = vmatpush1.msra.mxu0 %v755
    %757 = vmatprep.subr.mxu0 0.0
    %v758 = vand.u32 %v29, 4294901760
    %759 = vmatpush1.msra.mxu0 %v758
    %760 = vmatprep.subr.mxu0 0.0
    %v761 = vand.u32 %v30, 4294901760
    %762 = vmatpush1.msra.mxu0 %v761
    %763 = vmatprep.subr.mxu0 0.0
    %v764 = vand.u32 %v31, 4294901760
    %765 = vmatpush1.msra.mxu0 %v764
    %766 = vmatprep.subr.mxu0 0.0
    %v767 = vand.u32 %v32, 4294901760
    %768 = vmatpush1.msra.mxu0 %v767
    %769 = vmatprep.subr.mxu0 0.0
    %v770 = vand.u32 %v33, 4294901760
    %771 = vmatpush1.msra.mxu0 %v770
    %772 = vmatprep.subr.mxu0 0.0
    %v773 = vand.u32 %v34, 4294901760
    %774 = vmatpush1.msra.mxu0 %v773
    %775 = vmatprep.subr.mxu0 0.0
    %v776 = vand.u32 %v35, 4294901760
    %777 = vmatpush1.msra.mxu0 %v776
    %778 = vmatprep.subr.mxu0 0.0
    %v779 = vand.u32 %v36, 4294901760
    %780 = vmatpush1.msra.mxu0 %v779
    %781 = vmatprep.subr.mxu0 0.0
    %v782 = vand.u32 %v37, 4294901760
    %783 = vmatpush1.msra.mxu0 %v782
    %784 = vmatprep.subr.mxu0 0.0
    %v785 = vand.u32 %v38, 4294901760
    %786 = vmatpush1.msra.mxu0 %v785
    %787 = vmatprep.subr.mxu0 0.0
    %788 = vmatpush1.msra.mxu0 0.0
    %789 = vmatprep.subr.mxu0 0.0
    %790 = vmatpush1.msra.mxu0 0.0
    %791 = vmatprep.subr.mxu0 0.0
    %792 = vmatpush1.msra.mxu0 0.0
    %793 = vmatprep.subr.mxu0 0.0
    %794 = vmatpush1.msra.mxu0 0.0
    %795 = vmatprep.subr.mxu0 0.0
    %796 = vmatpush1.msra.mxu0 0.0
    %797 = vmatprep.subr.mxu0 0.0
    %798 = vmatpush1.msra.mxu0 0.0
    %799 = vmatprep.subr.mxu0 0.0
    %800 = vmatpush1.msra.mxu0 0.0
    %801 = vmatprep.subr.mxu0 0.0
    %802 = vmatpush1.msra.mxu0 0.0
    %803 = vmatprep.subr.mxu0 0.0
    %804 = vmatpush1.msra.mxu0 0.0
    %805 = vmatprep.subr.mxu0 0.0
    %806 = vmatpush1.msra.mxu0 0.0
    %807 = vmatprep.subr.mxu0 0.0
    %808 = vmatpush1.msra.mxu0 0.0
    %809 = vmatprep.subr.mxu0 0.0
    %810 = vmatpush1.msra.mxu0 0.0
    %811 = vmatprep.subr.mxu0 0.0
    %812 = vmatpush1.msra.mxu0 0.0
    %813 = vmatprep.subr.mxu0 0.0
    %814 = vmatpush1.msra.mxu0 0.0
    %815 = vmatprep.subr.mxu0 0.0
    %816 = vmatpush1.msra.mxu0 0.0
    %817 = vmatprep.subr.mxu0 0.0
    %818 = vmatpush1.msra.mxu0 0.0
    %819 = vmatprep.mubr.f32.mxu0 0.0
    %v820 = vand.u32 %v737, 4294901760
    %v821 = vsub.f32 %v737, %v820
    %v822 = vand.u32 %v821, 4294901760
    %v823 = vsub.f32 %v821, %v822
    %v824 = vand.u32 %v823, 4294901760
    %825 = vmatmul.mubr.f32.gmra.mrb[0].mxu0 %v824
    %v826 = vpop.f32.mrb[0].mxu0
    %v827 = vadd.f32 0.0, %v826
    %v828 = vpop.f32.mrb[0].mxu0
    %829 = vmatprep.mubr.f32.mxu0 0.0
    %v830 = vand.u32 %v738, 4294901760
    %v831 = vsub.f32 %v738, %v830
    %v832 = vand.u32 %v831, 4294901760
    %v833 = vsub.f32 %v831, %v832
    %v834 = vand.u32 %v833, 4294901760
    %835 = vmatmul.mubr.f32.gmra.mrb[0].mxu0 %v834
    %v836 = vpop.f32.mrb[0].mxu0
    %v837 = vadd.f32 0.0, %v836
    %v838 = vpop.f32.mrb[0].mxu0
    %839 = vdwg.mxu0
    %840 = vmatprep.subr.mxu0 0.0
    %v841 = vand.u32 %v23, 4294901760
    %v842 = vsub.f32 %v23, %v841
    %v843 = vand.u32 %v842, 4294901760
    %v844 = vsub.f32 %v842, %v843
    %v845 = vand.u32 %v844, 4294901760
    %846 = vmatpush1.msra.mxu0 %v845
    %847 = vmatprep.subr.mxu0 0.0
    %v848 = vand.u32 %v24, 4294901760
    %v849 = vsub.f32 %v24, %v848
    %v850 = vand.u32 %v849, 4294901760
    %v851 = vsub.f32 %v849, %v850
    %v852 = vand.u32 %v851, 4294901760
    %853 = vmatpush1.msra.mxu0 %v852
    %854 = vmatprep.subr.mxu0 0.0
    %v855 = vand.u32 %v25, 4294901760
    %v856 = vsub.f32 %v25, %v855
    %v857 = vand.u32 %v856, 4294901760
    %v858 = vsub.f32 %v856, %v857
    %v859 = vand.u32 %v858, 4294901760
    %860 = vmatpush1.msra.mxu0 %v859
    %861 = vmatprep.subr.mxu0 0.0
    %v862 = vand.u32 %v26, 4294901760
    %v863 = vsub.f32 %v26, %v862
    %v864 = vand.u32 %v863, 4294901760
    %v865 = vsub.f32 %v863, %v864
    %v866 = vand.u32 %v865, 4294901760
    %867 = vmatpush1.msra.mxu0 %v866
    %868 = vmatprep.subr.mxu0 0.0
    %v869 = vand.u32 %v27, 4294901760
    %v870 = vsub.f32 %v27, %v869
    %v871 = vand.u32 %v870, 4294901760
    %v872 = vsub.f32 %v870, %v871
    %v873 = vand.u32 %v872, 4294901760
    %874 = vmatpush1.msra.mxu0 %v873
    %875 = vmatprep.subr.mxu0 0.0
    %v876 = vand.u32 %v28, 4294901760
    %v877 = vsub.f32 %v28, %v876
    %v878 = vand.u32 %v877, 4294901760
    %v879 = vsub.f32 %v877, %v878
    %v880 = vand.u32 %v879, 4294901760
    %881 = vmatpush1.msra.mxu0 %v880
    %882 = vmatprep.subr.mxu0 0.0
    %v883 = vand.u32 %v29, 4294901760
    %v884 = vsub.f32 %v29, %v883
    %v885 = vand.u32 %v884, 4294901760
    %v886 = vsub.f32 %v884, %v885
    %v887 = vand.u32 %v886, 4294901760
    %888 = vmatpush1.msra.mxu0 %v887
    %889 = vmatprep.subr.mxu0 0.0
    %v890 = vand.u32 %v30, 4294901760
    %v891 = vsub.f32 %v30, %v890
    %v892 = vand.u32 %v891, 4294901760
    %v893 = vsub.f32 %v891, %v892
    %v894 = vand.u32 %v893, 4294901760
    %895 = vmatpush1.msra.mxu0 %v894
    %896 = vmatprep.subr.mxu0 0.0
    %v897 = vand.u32 %v31, 4294901760
    %v898 = vsub.f32 %v31, %v897
    %v899 = vand.u32 %v898, 4294901760
    %v900 = vsub.f32 %v898, %v899
    %v901 = vand.u32 %v900, 4294901760
    %902 = vmatpush1.msra.mxu0 %v901
    %903 = vmatprep.subr.mxu0 0.0
    %v904 = vand.u32 %v32, 4294901760
    %v905 = vsub.f32 %v32, %v904
    %v906 = vand.u32 %v905, 4294901760
    %v907 = vsub.f32 %v905, %v906
    %v908 = vand.u32 %v907, 4294901760
    %909 = vmatpush1.msra.mxu0 %v908
    %910 = vmatprep.subr.mxu0 0.0
    %v911 = vand.u32 %v33, 4294901760
    %v912 = vsub.f32 %v33, %v911
    %v913 = vand.u32 %v912, 4294901760
    %v914 = vsub.f32 %v912, %v913
    %v915 = vand.u32 %v914, 4294901760
    %916 = vmatpush1.msra.mxu0 %v915
    %917 = vmatprep.subr.mxu0 0.0
    %v918 = vand.u32 %v34, 4294901760
    %v919 = vsub.f32 %v34, %v918
    %v920 = vand.u32 %v919, 4294901760
    %v921 = vsub.f32 %v919, %v920
    %v922 = vand.u32 %v921, 4294901760
    %923 = vmatpush1.msra.mxu0 %v922
    %924 = vmatprep.subr.mxu0 0.0
    %v925 = vand.u32 %v35, 4294901760
    %v926 = vsub.f32 %v35, %v925
    %v927 = vand.u32 %v926, 4294901760
    %v928 = vsub.f32 %v926, %v927
    %v929 = vand.u32 %v928, 4294901760
    %930 = vmatpush1.msra.mxu0 %v929
    %931 = vmatprep.subr.mxu0 0.0
    %v932 = vand.u32 %v36, 4294901760
    %v933 = vsub.f32 %v36, %v932
    %v934 = vand.u32 %v933, 4294901760
    %v935 = vsub.f32 %v933, %v934
    %v936 = vand.u32 %v935, 4294901760
    %937 = vmatpush1.msra.mxu0 %v936
    %938 = vmatprep.subr.mxu0 0.0
    %v939 = vand.u32 %v37, 4294901760
    %v940 = vsub.f32 %v37, %v939
    %v941 = vand.u32 %v940, 4294901760
    %v942 = vsub.f32 %v940, %v941
    %v943 = vand.u32 %v942, 4294901760
    %944 = vmatpush1.msra.mxu0 %v943
    %945 = vmatprep.subr.mxu0 0.0
    %v946 = vand.u32 %v38, 4294901760
    %v947 = vsub.f32 %v38, %v946
    %v948 = vand.u32 %v947, 4294901760
    %v949 = vsub.f32 %v947, %v948
    %v950 = vand.u32 %v949, 4294901760
    %951 = vmatpush1.msra.mxu0 %v950
    %952 = vmatprep.subr.mxu0 0.0
    %953 = vmatpush1.msra.mxu0 0.0
    %954 = vmatprep.subr.mxu0 0.0
    %955 = vmatpush1.msra.mxu0 0.0
    %956 = vmatprep.subr.mxu0 0.0
    %957 = vmatpush1.msra.mxu0 0.0
    %958 = vmatprep.subr.mxu0 0.0
    %959 = vmatpush1.msra.mxu0 0.0
    %960 = vmatprep.subr.mxu0 0.0
    %961 = vmatpush1.msra.mxu0 0.0
    %962 = vmatprep.subr.mxu0 0.0
    %963 = vmatpush1.msra.mxu0 0.0
    %964 = vmatprep.subr.mxu0 0.0
    %965 = vmatpush1.msra.mxu0 0.0
    %966 = vmatprep.subr.mxu0 0.0
    %967 = vmatpush1.msra.mxu0 0.0
    %968 = vmatprep.subr.mxu0 0.0
    %969 = vmatpush1.msra.mxu0 0.0
    %970 = vmatprep.subr.mxu0 0.0
    %971 = vmatpush1.msra.mxu0 0.0
    %972 = vmatprep.subr.mxu0 0.0
    %973 = vmatpush1.msra.mxu0 0.0
    %974 = vmatprep.subr.mxu0 0.0
    %975 = vmatpush1.msra.mxu0 0.0
    %976 = vmatprep.subr.mxu0 0.0
    %977 = vmatpush1.msra.mxu0 0.0
    %978 = vmatprep.subr.mxu0 0.0
    %979 = vmatpush1.msra.mxu0 0.0
    %980 = vmatprep.subr.mxu0 0.0
    %981 = vmatpush1.msra.mxu0 0.0
    %982 = vmatprep.subr.mxu0 0.0
    %983 = vmatpush1.msra.mxu0 0.0
    %984 = vmatprep.mubr.f32.mxu0 0.0
    %v985 = vand.u32 %v737, 4294901760
    %986 = vmatmul.mubr.f32.gmra.mrb[0].mxu0 %v985
    %v987 = vpop.f32.mrb[0].mxu0
    %v988 = vadd.f32 %v827, %v987
    %v989 = vpop.f32.mrb[0].mxu0
    %990 = vmatprep.mubr.f32.mxu0 0.0
    %v991 = vand.u32 %v738, 4294901760
    %992 = vmatmul.mubr.f32.gmra.mrb[0].mxu0 %v991
    %v993 = vpop.f32.mrb[0].mxu0
    %v994 = vadd.f32 %v837, %v993
    %v995 = vpop.f32.mrb[0].mxu0
    %996 = vdwg.mxu0
    %997 = vmatprep.subr.mxu0 0.0
    %v998 = vand.u32 %v23, 4294901760
    %v999 = vsub.f32 %v23, %v998
    %1000 = vmatpush1.msra.mxu0 %v999
    %1001 = vmatprep.subr.mxu0 0.0
    %v1002 = vand.u32 %v24, 4294901760
    %v1003 = vsub.f32 %v24, %v1002
    %1004 = vmatpush1.msra.mxu0 %v1003
    %1005 = vmatprep.subr.mxu0 0.0
    %v1006 = vand.u32 %v25, 4294901760
    %v1007 = vsub.f32 %v25, %v1006
    %1008 = vmatpush1.msra.mxu0 %v1007
    %1009 = vmatprep.subr.mxu0 0.0
    %v1010 = vand.u32 %v26, 4294901760
    %v1011 = vsub.f32 %v26, %v1010
    %1012 = vmatpush1.msra.mxu0 %v1011
    %1013 = vmatprep.subr.mxu0 0.0
    %v1014 = vand.u32 %v27, 4294901760
    %v1015 = vsub.f32 %v27, %v1014
    %1016 = vmatpush1.msra.mxu0 %v1015
    %1017 = vmatprep.subr.mxu0 0.0
    %v1018 = vand.u32 %v28, 4294901760
    %v1019 = vsub.f32 %v28, %v1018
    %1020 = vmatpush1.msra.mxu0 %v1019
    %1021 = vmatprep.subr.mxu0 0.0
    %v1022 = vand.u32 %v29, 4294901760
    %v1023 = vsub.f32 %v29, %v1022
    %1024 = vmatpush1.msra.mxu0 %v1023
    %1025 = vmatprep.subr.mxu0 0.0
    %v1026 = vand.u32 %v30, 4294901760
    %v1027 = vsub.f32 %v30, %v1026
    %1028 = vmatpush1.msra.mxu0 %v1027
    %1029 = vmatprep.subr.mxu0 0.0
    %v1030 = vand.u32 %v31, 4294901760
    %v1031 = vsub.f32 %v31, %v1030
    %1032 = vmatpush1.msra.mxu0 %v1031
    %1033 = vmatprep.subr.mxu0 0.0
    %v1034 = vand.u32 %v32, 4294901760
    %v1035 = vsub.f32 %v32, %v1034
    %1036 = vmatpush1.msra.mxu0 %v1035
    %1037 = vmatprep.subr.mxu0 0.0
    %v1038 = vand.u32 %v33, 4294901760
    %v1039 = vsub.f32 %v33, %v1038
    %1040 = vmatpush1.msra.mxu0 %v1039
    %1041 = vmatprep.subr.mxu0 0.0
    %v1042 = vand.u32 %v34, 4294901760
    %v1043 = vsub.f32 %v34, %v1042
    %1044 = vmatpush1.msra.mxu0 %v1043
    %1045 = vmatprep.subr.mxu0 0.0
    %v1046 = vand.u32 %v35, 4294901760
    %v1047 = vsub.f32 %v35, %v1046
    %1048 = vmatpush1.msra.mxu0 %v1047
    %1049 = vmatprep.subr.mxu0 0.0
    %v1050 = vand.u32 %v36, 4294901760
    %v1051 = vsub.f32 %v36, %v1050
    %1052 = vmatpush1.msra.mxu0 %v1051
    %1053 = vmatprep.subr.mxu0 0.0
    %v1054 = vand.u32 %v37, 4294901760
    %v1055 = vsub.f32 %v37, %v1054
    %1056 = vmatpush1.msra.mxu0 %v1055
    %1057 = vmatprep.subr.mxu0 0.0
    %v1058 = vand.u32 %v38, 4294901760
    %v1059 = vsub.f32 %v38, %v1058
    %1060 = vmatpush1.msra.mxu0 %v1059
    %1061 = vmatprep.subr.mxu0 0.0
    %1062 = vmatpush1.msra.mxu0 0.0
    %1063 = vmatprep.subr.mxu0 0.0
    %1064 = vmatpush1.msra.mxu0 0.0
    %1065 = vmatprep.subr.mxu0 0.0
    %1066 = vmatpush1.msra.mxu0 0.0
    %1067 = vmatprep.subr.mxu0 0.0
    %1068 = vmatpush1.msra.mxu0 0.0
    %1069 = vmatprep.subr.mxu0 0.0
    %1070 = vmatpush1.msra.mxu0 0.0
    %1071 = vmatprep.subr.mxu0 0.0
    %1072 = vmatpush1.msra.mxu0 0.0
    %1073 = vmatprep.subr.mxu0 0.0
    %1074 = vmatpush1.msra.mxu0 0.0
    %1075 = vmatprep.subr.mxu0 0.0
    %1076 = vmatpush1.msra.mxu0 0.0
    %1077 = vmatprep.subr.mxu0 0.0
    %1078 = vmatpush1.msra.mxu0 0.0
    %1079 = vmatprep.subr.mxu0 0.0
    %1080 = vmatpush1.msra.mxu0 0.0
    %1081 = vmatprep.subr.mxu0 0.0
    %1082 = vmatpush1.msra.mxu0 0.0
    %1083 = vmatprep.subr.mxu0 0.0
    %1084 = vmatpush1.msra.mxu0 0.0
    %1085 = vmatprep.subr.mxu0 0.0
    %1086 = vmatpush1.msra.mxu0 0.0
    %1087 = vmatprep.subr.mxu0 0.0
    %1088 = vmatpush1.msra.mxu0 0.0
    %1089 = vmatprep.subr.mxu0 0.0
    %1090 = vmatpush1.msra.mxu0 0.0
    %1091 = vmatprep.subr.mxu0 0.0
    %1092 = vmatpush1.msra.mxu0 0.0
    %1093 = vmatprep.mubr.f32.mxu0 0.0
    %v1094 = vand.u32 %v737, 4294901760
    %v1095 = vsub.f32 %v737, %v1094
    %1096 = vmatmul.mubr.f32.gmra.mrb[0].mxu0 %v1095
    %v1097 = vpop.f32.mrb[0].mxu0
    %v1098 = vadd.f32 %v988, %v1097
    %v1099 = vpop.f32.mrb[0].mxu0
    %1100 = vmatprep.mubr.f32.mxu0 0.0
    %v1101 = vand.u32 %v738, 4294901760
    %v1102 = vsub.f32 %v738, %v1101
    %1103 = vmatmul.mubr.f32.gmra.mrb[0].mxu0 %v1102
    %v1104 = vpop.f32.mrb[0].mxu0
    %v1105 = vadd.f32 %v994, %v1104
    %v1106 = vpop.f32.mrb[0].mxu0
    %1107 = vdwg.mxu0
    %1108 = vmatprep.subr.mxu0 0.0
    %v1109 = vand.u32 %v23, 4294901760
    %1110 = vmatpush1.msra.mxu0 %v1109
    %1111 = vmatprep.subr.mxu0 0.0
    %v1112 = vand.u32 %v24, 4294901760
    %1113 = vmatpush1.msra.mxu0 %v1112
    %1114 = vmatprep.subr.mxu0 0.0
    %v1115 = vand.u32 %v25, 4294901760
    %1116 = vmatpush1.msra.mxu0 %v1115
    %1117 = vmatprep.subr.mxu0 0.0
    %v1118 = vand.u32 %v26, 4294901760
    %1119 = vmatpush1.msra.mxu0 %v1118
    %1120 = vmatprep.subr.mxu0 0.0
    %v1121 = vand.u32 %v27, 4294901760
    %1122 = vmatpush1.msra.mxu0 %v1121
    %1123 = vmatprep.subr.mxu0 0.0
    %v1124 = vand.u32 %v28, 4294901760
    %1125 = vmatpush1.msra.mxu0 %v1124
    %1126 = vmatprep.subr.mxu0 0.0
    %v1127 = vand.u32 %v29, 4294901760
    %1128 = vmatpush1.msra.mxu0 %v1127
    %1129 = vmatprep.subr.mxu0 0.0
    %v1130 = vand.u32 %v30, 4294901760
    %1131 = vmatpush1.msra.mxu0 %v1130
    %1132 = vmatprep.subr.mxu0 0.0
    %v1133 = vand.u32 %v31, 4294901760
    %1134 = vmatpush1.msra.mxu0 %v1133
    %1135 = vmatprep.subr.mxu0 0.0
    %v1136 = vand.u32 %v32, 4294901760
    %1137 = vmatpush1.msra.mxu0 %v1136
    %1138 = vmatprep.subr.mxu0 0.0
    %v1139 = vand.u32 %v33, 4294901760
    %1140 = vmatpush1.msra.mxu0 %v1139
    %1141 = vmatprep.subr.mxu0 0.0
    %v1142 = vand.u32 %v34, 4294901760
    %1143 = vmatpush1.msra.mxu0 %v1142
    %1144 = vmatprep.subr.mxu0 0.0
    %v1145 = vand.u32 %v35, 4294901760
    %1146 = vmatpush1.msra.mxu0 %v1145
    %1147 = vmatprep.subr.mxu0 0.0
    %v1148 = vand.u32 %v36, 4294901760
    %1149 = vmatpush1.msra.mxu0 %v1148
    %1150 = vmatprep.subr.mxu0 0.0
    %v1151 = vand.u32 %v37, 4294901760
    %1152 = vmatpush1.msra.mxu0 %v1151
    %1153 = vmatprep.subr.mxu0 0.0
    %v1154 = vand.u32 %v38, 4294901760
    %1155 = vmatpush1.msra.mxu0 %v1154
    %1156 = vmatprep.subr.mxu0 0.0
    %1157 = vmatpush1.msra.mxu0 0.0
    %1158 = vmatprep.subr.mxu0 0.0
    %1159 = vmatpush1.msra.mxu0 0.0
    %1160 = vmatprep.subr.mxu0 0.0
    %1161 = vmatpush1.msra.mxu0 0.0
    %1162 = vmatprep.subr.mxu0 0.0
    %1163 = vmatpush1.msra.mxu0 0.0
    %1164 = vmatprep.subr.mxu0 0.0
    %1165 = vmatpush1.msra.mxu0 0.0
    %1166 = vmatprep.subr.mxu0 0.0
    %1167 = vmatpush1.msra.mxu0 0.0
    %1168 = vmatprep.subr.mxu0 0.0
    %1169 = vmatpush1.msra.mxu0 0.0
    %1170 = vmatprep.subr.mxu0 0.0
    %1171 = vmatpush1.msra.mxu0 0.0
    %1172 = vmatprep.subr.mxu0 0.0
    %1173 = vmatpush1.msra.mxu0 0.0
    %1174 = vmatprep.subr.mxu0 0.0
    %1175 = vmatpush1.msra.mxu0 0.0
    %1176 = vmatprep.subr.mxu0 0.0
    %1177 = vmatpush1.msra.mxu0 0.0
    %1178 = vmatprep.subr.mxu0 0.0
    %1179 = vmatpush1.msra.mxu0 0.0
    %1180 = vmatprep.subr.mxu0 0.0
    %1181 = vmatpush1.msra.mxu0 0.0
    %1182 = vmatprep.subr.mxu0 0.0
    %1183 = vmatpush1.msra.mxu0 0.0
    %1184 = vmatprep.subr.mxu0 0.0
    %1185 = vmatpush1.msra.mxu0 0.0
    %1186 = vmatprep.subr.mxu0 0.0
    %1187 = vmatpush1.msra.mxu0 0.0
    %1188 = vmatprep.mubr.f32.mxu0 0.0
    %v1189 = vand.u32 %v737, 4294901760
    %v1190 = vsub.f32 %v737, %v1189
    %v1191 = vand.u32 %v1190, 4294901760
    %1192 = vmatmul.mubr.f32.gmra.mrb[0].mxu0 %v1191
    %v1193 = vpop.f32.mrb[0].mxu0
    %v1194 = vadd.f32 %v1098, %v1193
    %v1195 = vpop.f32.mrb[0].mxu0
    %1196 = vmatprep.mubr.f32.mxu0 0.0
    %v1197 = vand.u32 %v738, 4294901760
    %v1198 = vsub.f32 %v738, %v1197
    %v1199 = vand.u32 %v1198, 4294901760
    %1200 = vmatmul.mubr.f32.gmra.mrb[0].mxu0 %v1199
    %v1201 = vpop.f32.mrb[0].mxu0
    %v1202 = vadd.f32 %v1105, %v1201
    %v1203 = vpop.f32.mrb[0].mxu0
    %1204 = vdwg.mxu0
    %1205 = vmatprep.subr.mxu0 0.0
    %v1206 = vand.u32 %v23, 4294901760
    %v1207 = vsub.f32 %v23, %v1206
    %v1208 = vand.u32 %v1207, 4294901760
    %1209 = vmatpush1.msra.mxu0 %v1208
    %1210 = vmatprep.subr.mxu0 0.0
    %v1211 = vand.u32 %v24, 4294901760
    %v1212 = vsub.f32 %v24, %v1211
    %v1213 = vand.u32 %v1212, 4294901760
    %1214 = vmatpush1.msra.mxu0 %v1213
    %1215 = vmatprep.subr.mxu0 0.0
    %v1216 = vand.u32 %v25, 4294901760
    %v1217 = vsub.f32 %v25, %v1216
    %v1218 = vand.u32 %v1217, 4294901760
    %1219 = vmatpush1.msra.mxu0 %v1218
    %1220 = vmatprep.subr.mxu0 0.0
    %v1221 = vand.u32 %v26, 4294901760
    %v1222 = vsub.f32 %v26, %v1221
    %v1223 = vand.u32 %v1222, 4294901760
    %1224 = vmatpush1.msra.mxu0 %v1223
    %1225 = vmatprep.subr.mxu0 0.0
    %v1226 = vand.u32 %v27, 4294901760
    %v1227 = vsub.f32 %v27, %v1226
    %v1228 = vand.u32 %v1227, 4294901760
    %1229 = vmatpush1.msra.mxu0 %v1228
    %1230 = vmatprep.subr.mxu0 0.0
    %v1231 = vand.u32 %v28, 4294901760
    %v1232 = vsub.f32 %v28, %v1231
    %v1233 = vand.u32 %v1232, 4294901760
    %1234 = vmatpush1.msra.mxu0 %v1233
    %1235 = vmatprep.subr.mxu0 0.0
    %v1236 = vand.u32 %v29, 4294901760
    %v1237 = vsub.f32 %v29, %v1236
    %v1238 = vand.u32 %v1237, 4294901760
    %1239 = vmatpush1.msra.mxu0 %v1238
    %1240 = vmatprep.subr.mxu0 0.0
    %v1241 = vand.u32 %v30, 4294901760
    %v1242 = vsub.f32 %v30, %v1241
    %v1243 = vand.u32 %v1242, 4294901760
    %1244 = vmatpush1.msra.mxu0 %v1243
    %1245 = vmatprep.subr.mxu0 0.0
    %v1246 = vand.u32 %v31, 4294901760
    %v1247 = vsub.f32 %v31, %v1246
    %v1248 = vand.u32 %v1247, 4294901760
    %1249 = vmatpush1.msra.mxu0 %v1248
    %1250 = vmatprep.subr.mxu0 0.0
    %v1251 = vand.u32 %v32, 4294901760
    %v1252 = vsub.f32 %v32, %v1251
    %v1253 = vand.u32 %v1252, 4294901760
    %1254 = vmatpush1.msra.mxu0 %v1253
    %1255 = vmatprep.subr.mxu0 0.0
    %v1256 = vand.u32 %v33, 4294901760
    %v1257 = vsub.f32 %v33, %v1256
    %v1258 = vand.u32 %v1257, 4294901760
    %1259 = vmatpush1.msra.mxu0 %v1258
    %1260 = vmatprep.subr.mxu0 0.0
    %v1261 = vand.u32 %v34, 4294901760
    %v1262 = vsub.f32 %v34, %v1261
    %v1263 = vand.u32 %v1262, 4294901760
    %1264 = vmatpush1.msra.mxu0 %v1263
    %1265 = vmatprep.subr.mxu0 0.0
    %v1266 = vand.u32 %v35, 4294901760
    %v1267 = vsub.f32 %v35, %v1266
    %v1268 = vand.u32 %v1267, 4294901760
    %1269 = vmatpush1.msra.mxu0 %v1268
    %1270 = vmatprep.subr.mxu0 0.0
    %v1271 = vand.u32 %v36, 4294901760
    %v1272 = vsub.f32 %v36, %v1271
    %v1273 = vand.u32 %v1272, 4294901760
    %1274 = vmatpush1.msra.mxu0 %v1273
    %1275 = vmatprep.subr.mxu0 0.0
    %v1276 = vand.u32 %v37, 4294901760
    %v1277 = vsub.f32 %v37, %v1276
    %v1278 = vand.u32 %v1277, 4294901760
    %1279 = vmatpush1.msra.mxu0 %v1278
    %1280 = vmatprep.subr.mxu0 0.0
    %v1281 = vand.u32 %v38, 4294901760
    %v1282 = vsub.f32 %v38, %v1281
    %v1283 = vand.u32 %v1282, 4294901760
    %1284 = vmatpush1.msra.mxu0 %v1283
    %1285 = vmatprep.subr.mxu0 0.0
    %1286 = vmatpush1.msra.mxu0 0.0
    %1287 = vmatprep.subr.mxu0 0.0
    %1288 = vmatpush1.msra.mxu0 0.0
    %1289 = vmatprep.subr.mxu0 0.0
    %1290 = vmatpush1.msra.mxu0 0.0
    %1291 = vmatprep.subr.mxu0 0.0
    %1292 = vmatpush1.msra.mxu0 0.0
    %1293 = vmatprep.subr.mxu0 0.0
    %1294 = vmatpush1.msra.mxu0 0.0
    %1295 = vmatprep.subr.mxu0 0.0
    %1296 = vmatpush1.msra.mxu0 0.0
    %1297 = vmatprep.subr.mxu0 0.0
    %1298 = vmatpush1.msra.mxu0 0.0
    %1299 = vmatprep.subr.mxu0 0.0
    %1300 = vmatpush1.msra.mxu0 0.0
    %1301 = vmatprep.subr.mxu0 0.0
    %1302 = vmatpush1.msra.mxu0 0.0
    %1303 = vmatprep.subr.mxu0 0.0
    %1304 = vmatpush1.msra.mxu0 0.0
    %1305 = vmatprep.subr.mxu0 0.0
    %1306 = vmatpush1.msra.mxu0 0.0
    %1307 = vmatprep.subr.mxu0 0.0
    %1308 = vmatpush1.msra.mxu0 0.0
    %1309 = vmatprep.subr.mxu0 0.0
    %1310 = vmatpush1.msra.mxu0 0.0
    %1311 = vmatprep.subr.mxu0 0.0
    %1312 = vmatpush1.msra.mxu0 0.0
    %1313 = vmatprep.subr.mxu0 0.0
    %1314 = vmatpush1.msra.mxu0 0.0
    %1315 = vmatprep.subr.mxu0 0.0
    %1316 = vmatpush1.msra.mxu0 0.0
    %1317 = vmatprep.mubr.f32.mxu0 0.0
    %v1318 = vand.u32 %v737, 4294901760
    %1319 = vmatmul.mubr.f32.gmra.mrb[0].mxu0 %v1318
    %v1320 = vpop.f32.mrb[0].mxu0
    %v1321 = vadd.f32 %v1194, %v1320
    %v1322 = vpop.f32.mrb[0].mxu0
    %1323 = vmatprep.mubr.f32.mxu0 0.0
    %v1324 = vand.u32 %v738, 4294901760
    %1325 = vmatmul.mubr.f32.gmra.mrb[0].mxu0 %v1324
    %v1326 = vpop.f32.mrb[0].mxu0
    %v1327 = vadd.f32 %v1202, %v1326
    %v1328 = vpop.f32.mrb[0].mxu0
    %1329 = vdwg.mxu0
    %1330 = vmatprep.subr.mxu0 0.0
    %v1331 = vand.u32 %v23, 4294901760
    %1332 = vmatpush1.msra.mxu0 %v1331
    %1333 = vmatprep.subr.mxu0 0.0
    %v1334 = vand.u32 %v24, 4294901760
    %1335 = vmatpush1.msra.mxu0 %v1334
    %1336 = vmatprep.subr.mxu0 0.0
    %v1337 = vand.u32 %v25, 4294901760
    %1338 = vmatpush1.msra.mxu0 %v1337
    %1339 = vmatprep.subr.mxu0 0.0
    %v1340 = vand.u32 %v26, 4294901760
    %1341 = vmatpush1.msra.mxu0 %v1340
    %1342 = vmatprep.subr.mxu0 0.0
    %v1343 = vand.u32 %v27, 4294901760
    %1344 = vmatpush1.msra.mxu0 %v1343
    %1345 = vmatprep.subr.mxu0 0.0
    %v1346 = vand.u32 %v28, 4294901760
    %1347 = vmatpush1.msra.mxu0 %v1346
    %1348 = vmatprep.subr.mxu0 0.0
    %v1349 = vand.u32 %v29, 4294901760
    %1350 = vmatpush1.msra.mxu0 %v1349
    %1351 = vmatprep.subr.mxu0 0.0
    %v1352 = vand.u32 %v30, 4294901760
    %1353 = vmatpush1.msra.mxu0 %v1352
    %1354 = vmatprep.subr.mxu0 0.0
    %v1355 = vand.u32 %v31, 4294901760
    %1356 = vmatpush1.msra.mxu0 %v1355
    %1357 = vmatprep.subr.mxu0 0.0
    %v1358 = vand.u32 %v32, 4294901760
    %1359 = vmatpush1.msra.mxu0 %v1358
    %1360 = vmatprep.subr.mxu0 0.0
    %v1361 = vand.u32 %v33, 4294901760
    %1362 = vmatpush1.msra.mxu0 %v1361
    %1363 = vmatprep.subr.mxu0 0.0
    %v1364 = vand.u32 %v34, 4294901760
    %1365 = vmatpush1.msra.mxu0 %v1364
    %1366 = vmatprep.subr.mxu0 0.0
    %v1367 = vand.u32 %v35, 4294901760
    %1368 = vmatpush1.msra.mxu0 %v1367
    %1369 = vmatprep.subr.mxu0 0.0
    %v1370 = vand.u32 %v36, 4294901760
    %1371 = vmatpush1.msra.mxu0 %v1370
    %1372 = vmatprep.subr.mxu0 0.0
    %v1373 = vand.u32 %v37, 4294901760
    %1374 = vmatpush1.msra.mxu0 %v1373
    %1375 = vmatprep.subr.mxu0 0.0
    %v1376 = vand.u32 %v38, 4294901760
    %1377 = vmatpush1.msra.mxu0 %v1376
    %1378 = vmatprep.subr.mxu0 0.0
    %1379 = vmatpush1.msra.mxu0 0.0
    %1380 = vmatprep.subr.mxu0 0.0
    %1381 = vmatpush1.msra.mxu0 0.0
    %1382 = vmatprep.subr.mxu0 0.0
    %1383 = vmatpush1.msra.mxu0 0.0
    %1384 = vmatprep.subr.mxu0 0.0
    %1385 = vmatpush1.msra.mxu0 0.0
    %1386 = vmatprep.subr.mxu0 0.0
    %1387 = vmatpush1.msra.mxu0 0.0
    %1388 = vmatprep.subr.mxu0 0.0
    %1389 = vmatpush1.msra.mxu0 0.0
    %1390 = vmatprep.subr.mxu0 0.0
    %1391 = vmatpush1.msra.mxu0 0.0
    %1392 = vmatprep.subr.mxu0 0.0
    %1393 = vmatpush1.msra.mxu0 0.0
    %1394 = vmatprep.subr.mxu0 0.0
    %1395 = vmatpush1.msra.mxu0 0.0
    %1396 = vmatprep.subr.mxu0 0.0
    %1397 = vmatpush1.msra.mxu0 0.0
    %1398 = vmatprep.subr.mxu0 0.0
    %1399 = vmatpush1.msra.mxu0 0.0
    %1400 = vmatprep.subr.mxu0 0.0
    %1401 = vmatpush1.msra.mxu0 0.0
    %1402 = vmatprep.subr.mxu0 0.0
    %1403 = vmatpush1.msra.mxu0 0.0
    %1404 = vmatprep.subr.mxu0 0.0
    %1405 = vmatpush1.msra.mxu0 0.0
    %1406 = vmatprep.subr.mxu0 0.0
    %1407 = vmatpush1.msra.mxu0 0.0
    %1408 = vmatprep.subr.mxu0 0.0
    %1409 = vmatpush1.msra.mxu0 0.0
    %1410 = vmatprep.mubr.f32.mxu0 0.0
    %v1411 = vand.u32 %v737, 4294901760
    %1412 = vmatmul.mubr.f32.gmra.mrb[0].mxu0 %v1411
    %v1413 = vpop.f32.mrb[0].mxu0
    %v1414 = vadd.f32 %v1321, %v1413
    %v1415 = vpop.f32.mrb[0].mxu0
    %1416 = vmatprep.mubr.f32.mxu0 0.0
    %v1417 = vand.u32 %v738, 4294901760
    %1418 = vmatmul.mubr.f32.gmra.mrb[0].mxu0 %v1417
    %v1419 = vpop.f32.mrb[0].mxu0
    %v1420 = vadd.f32 %v1327, %v1419
    %v1421 = vpop.f32.mrb[0].mxu0
    %1422 = vdwg.mxu0
    %v1423 = vmul.f32 %v1414, 0.007874016
    %v1424 = vmul.f32 %v1420, 0.007874016
    %v1425 = vrsqrt.pop %v1423
    %v1426 = vmul.f32 %v1423, %v1425
    %vm1427 = vcmp.eq.f32.partialorder %v1423, inf
    %v1428 = vsel %vm1427, %v1423, %v1426
    %vm1429 = vcmp.eq.f32.partialorder %v1423, 0.0
    %v1430 = vand.u32 %v1423, 2147483648
    %v1431 = vsel %vm1429, %v1430, %v1428
    %v1432 = vrsqrt.pop %v1424
    %v1433 = vmul.f32 %v1424, %v1432
    %vm1434 = vcmp.eq.f32.partialorder %v1424, inf
    %v1435 = vsel %vm1434, %v1424, %v1433
    %vm1436 = vcmp.eq.f32.partialorder %v1424, 0.0
    %v1437 = vand.u32 %v1424, 2147483648
    %v1438 = vsel %vm1436, %v1437, %v1435
    %v1439 = vadd.f32 %v1431, 1e-05
    %v1440 = vadd.f32 %v1438, 1e-05
    %v1441 = vrcp.pop %v1439
    %v1442 = vrcp.pop %v1440
    %v1443 = vmul.f32 %v1439, %v1441
    %v1444 = vmul.f32 %v1440, %v1442
    %v1445 = vsub.f32 2.0, %v1443
    %v1446 = vsub.f32 2.0, %v1444
    %v1447 = vmul.f32 %v1441, %v1445
    %v1448 = vmul.f32 %v1442, %v1446
    %v1449 = vld [vmem:[%s3] sm:$0x1]
    %1451 = vset.pattern.permute.xlu0 0
    %1452 = vperm.xlu0 %1451, %v1447
    %v1453 = vpop.permute.xlu0 %1452
    %1456 = vset.pattern.permute.xlu0 0
    %1457 = vperm.xlu0 %1456, %v1448
    %v1458 = vpop.permute.xlu0 %1457
    %v1460 = vmul.f32 %v735, %v1453
    %v1461 = vmul.f32 %v736, %v1458
    %v1463 = vlaneseq
    %v1464 = vshrl.u32 %v1463, 7
    %v1465 = vsub.s32 0, %v1464
    %v1466 = vrot.slane %v1449, %v1465
    %v1468 = vmul.f32 %v1466, %v1460
    %v1469 = vmul.f32 %v1466, %v1461
    %v1470 = vld [vmem:[%s4] sm:$0x1]
    %v1472 = vlaneseq
    %v1473 = vshrl.u32 %v1472, 7
    %v1474 = vsub.s32 0, %v1473
    %v1475 = vrot.slane %v1470, %v1474
    %v1477 = vadd.f32 %v1468, %v1475
    %v1478 = vadd.f32 %v1469, %v1475
    %1479 = vst [vmem:[#allocation2] sm:$0xff] %v1477
    %1480 = vst [vmem:[#allocation2 + $0x8] sm:$0xff] %v1478
    // Predicated region
    $region22: #{tpu_custom_call.1} parent=1 // pred_check
      _
    $region23: #{tpu_custom_call.1} parent=1 // pred_check_branch
      %1482 = sbr.rel (0) target = $region25
    $region24: #{tpu_custom_call.1} parent=1 // pred_region
      %s1484 = ssub.s32 256, 256
      %1485 = vsyncadd [#allocation3], %s1484
      %s1486 = sshll.u32 [#allocation2], 4
      %s1487 = int_to_ptr.vmem [resolvable:$true] %s1486
      %1492 = dma.vmem_to_hbm [thread:$0]  %s1487, 256, %s5, [#allocation3], 128, 128, 8
    $region25: #{tpu_custom_call.1} parent=1 // pred_fallthru
      _
    // Predicated region
    $region26: #{tpu_custom_call.1} parent=1 // pred_check
      _
    $region27: #{tpu_custom_call.1} parent=1 // pred_check_branch
      %1494 = sbr.rel (0) target = $region29
    $region28: #{tpu_custom_call.1} parent=1 // pred_region
      %1495 = dma.done [#allocation3], 256
    $region29: #{tpu_custom_call.1} parent=1 // pred_fallthru
      _
    %1496 = vsyncpa [#allocation3], 1

</llo_original>
